<compile_context>
chip_gen: v7x
topology: tpu7x:2x2x1
jax: 0.10.0
libtpu: 0.0.40
codegen_flags: <defaults>
</compile_context>

<pallas_src>
import functools

import numpy as np
import jax
import jax.numpy as jnp
from jax.experimental import pallas as pl
from jax.experimental.pallas import tpu as pltpu

EPS = 1e-5
LANES = 128  # lane-dense channel padding for conv outputs / activations


# ---------------------------------------------------------------------------
# In-kernel helpers (trace-time inlined into the kernel bodies)
# ---------------------------------------------------------------------------
def _zero_halo(pad_buf, H, W, C):
    """Zero only the 1-pixel halo border of the (H+2, W+2, C) scratch."""
    z_row = jnp.zeros((1, W + 2, C), pad_buf.dtype)
    z_col = jnp.zeros((H, 1, C), pad_buf.dtype)
    pad_buf[0:1, :, :] = z_row
    pad_buf[H + 1:H + 2, :, :] = z_row
    pad_buf[1:H + 1, 0:1, :] = z_col
    pad_buf[1:H + 1, W + 1:W + 2, :] = z_col


def _conv3x3_and_stats(pad_buf, tap_buf, w_ref, y_ref, stats_ref, H, W):
    """3x3 'same' conv of one image as ONE MXU matmul over the tap matrix,
    plus fused single-pass BatchNorm statistics (sum, sum of squares)."""
    C = pad_buf.shape[-1]            # tap (input) channels
    Cp = w_ref.shape[-1]             # padded output channels (lane-dense, 128)
    HW = H * W

    # im2col: 9 shifted views of the padded tile -> (HW, 9*C) tap matrix.
    t = 0
    for dy in range(3):
        for dx in range(3):
            patch = pad_buf[dy:dy + H, dx:dx + W, :]         # (H, W, C)
            tap_buf[:, t * C:(t + 1) * C] = patch.reshape(HW, C)
            t += 1

    # Single MXU matmul: bf16 inputs, f32 accumulation.
    acc = jnp.dot(tap_buf[...].astype(jnp.bfloat16), w_ref[...],
                  preferred_element_type=jnp.float32)        # (HW, Cp) f32

    # Fused BN statistics: per-channel sum and sum-of-squares in the same pass
    # (no second mean-centred sweep over the activation).
    stats_ref[:, 0:1, :] = jnp.sum(acc, axis=0, keepdims=True).reshape(1, 1, Cp)
    stats_ref[:, 1:2, :] = jnp.sum(acc * acc, axis=0, keepdims=True).reshape(1, 1, Cp)

    # Lane-dense store of the raw conv output; normalisation is folded into the
    # next kernel once the global (over N,H,W) statistics are known.
    y_ref[...] = acc.reshape(1, H, W, Cp)


# ---------------------------------------------------------------------------
# Kernels
# ---------------------------------------------------------------------------
def conv_stats_kernel(x_ref, w_ref, y_ref, stats_ref, pad_buf, tap_buf):
    """conv1 (3x3, pad=1) of one image + BN1 statistics."""
    _, H, W, C = x_ref.shape
    _zero_halo(pad_buf, H, W, C)
    pad_buf[1:H + 1, 1:W + 1, :] = x_ref[...].reshape(H, W, C)
    _conv3x3_and_stats(pad_buf, tap_buf, w_ref, y_ref, stats_ref, H, W)


def bn_relu_conv_stats_kernel(y1_ref, scale_ref, shift_ref, w_ref,
                              y_ref, stats_ref, pad_buf, tap_buf, *, c_real):
    """Fused BN1 (folded scale/shift) + ReLU + conv2 + BN2 statistics."""
    _, H, W, Cp = y1_ref.shape
    HW = H * W
    x2 = y1_ref[...].reshape(HW, Cp)                          # lane-dense f32
    h = jnp.maximum(x2 * scale_ref[...] + shift_ref[...], 0.0)  # BN1 + ReLU
    _zero_halo(pad_buf, H, W, c_real)
    pad_buf[1:H + 1, 1:W + 1, :] = h[:, :c_real].reshape(H, W, c_real)
    _conv3x3_and_stats(pad_buf, tap_buf, w_ref, y_ref, stats_ref, H, W)


def bn_relu_kernel(y_ref, scale_ref, shift_ref, o_ref):
    """Final BN2 (folded scale/shift) + ReLU, lane-dense elementwise epilogue."""
    _, H, W, Cp = y_ref.shape
    x2 = y_ref[...].reshape(H * W, Cp)
    o = jnp.maximum(x2 * scale_ref[...] + shift_ref[...], 0.0)
    o_ref[...] = o.reshape(1, H, W, Cp)


# ---------------------------------------------------------------------------
# Wrapper
# ---------------------------------------------------------------------------
def _fold_bn(stats, gamma, beta, count, c_real, cp):
    """Fold batch statistics + affine params into one (scale, shift) pair."""
    s = jnp.sum(stats, axis=0)                          # (2, Cp)
    mean = s[0] / count
    var = jnp.maximum(s[1] / count - mean * mean, 0.0)  # biased variance (train-mode BN)
    g = jnp.pad(gamma.astype(jnp.float32), (0, cp - c_real))
    b = jnp.pad(beta.astype(jnp.float32), (0, cp - c_real))
    scale = g * jax.lax.rsqrt(var + EPS)
    shift = b - mean * scale
    return scale.reshape(1, cp), shift.reshape(1, cp)


def double_conv(x_nchw, w1, w2, g1, b1, g2, b2):
    """x_nchw: (N, Cin, H, W).  w1: (3,3,Cin,C1), w2: (3,3,C1,C2) (HWIO)."""
    N, Cin, H, W = x_nchw.shape
    C1 = w1.shape[-1]
    C2 = w2.shape[-1]
    Cp = LANES
    assert C1 <= Cp and C2 <= Cp
    HW = H * W
    count = N * H * W

    # NCHW -> NHWC glue.  Intermediates are zero-padded to 128 channels so every
    # activation store/load is lane-dense.  (Raw Cin is left at its natural size
    # to avoid inflating input HBM traffic; the tap matrix handles it.)
    x = jnp.transpose(x_nchw, (0, 2, 3, 1)).astype(jnp.float32)

    # Weights (3,3,Ci,Co) HWIO -> (9*Ci, Cp) bf16 tap-matmul form.
    def pack_w(w, ci, co):
        wk = w.reshape(9 * ci, co).astype(jnp.float32)
        return jnp.pad(wk, ((0, 0), (0, Cp - co))).astype(jnp.bfloat16)

    w1k = pack_w(w1, Cin, C1)       # (9*Cin, Cp)
    w2k = pack_w(w2, C1, C2)        # (9*C1,  Cp)

    cparams = pltpu.CompilerParams(
        dimension_semantics=("parallel",),      # batch axis -> shards across v7x's 2 TCs
        vmem_limit_bytes=32 * 1024 * 1024)      # explicit budget, fits v5e/v6e/v7x

    act_spec = pl.BlockSpec((1, H, W, Cp), lambda n: (n, 0, 0, 0))
    stats_spec = pl.BlockSpec((1, 2, Cp), lambda n: (n, 0, 0))
    vec_spec = pl.BlockSpec((1, Cp), lambda n: (0, 0))

    # --- kernel 1: conv1 + BN1 statistics ---------------------------------
    y1, st1 = pl.pallas_call(
        conv_stats_kernel,
        grid=(N,),
        out_shape=(jax.ShapeDtypeStruct((N, H, W, Cp), jnp.float32),
                   jax.ShapeDtypeStruct((N, 2, Cp), jnp.float32)),
        in_specs=[pl.BlockSpec((1, H, W, Cin), lambda n: (n, 0, 0, 0)),
                  pl.BlockSpec((9 * Cin, Cp), lambda n: (0, 0))],
        out_specs=(act_spec, stats_spec),
        scratch_shapes=[pltpu.VMEM((H + 2, W + 2, Cin), jnp.float32),
                        pltpu.VMEM((HW, 9 * Cin), jnp.float32)],
        compiler_params=cparams,
    )(x, w1k)

    scale1, shift1 = _fold_bn(st1, g1, b1, count, C1, Cp)

    # --- kernel 2: BN1 + ReLU fused with conv2 + BN2 statistics -----------
    y2, st2 = pl.pallas_call(
        functools.partial(bn_relu_conv_stats_kernel, c_real=C1),
        grid=(N,),
        out_shape=(jax.ShapeDtypeStruct((N, H, W, Cp), jnp.float32),
                   jax.ShapeDtypeStruct((N, 2, Cp), jnp.float32)),
        in_specs=[act_spec, vec_spec, vec_spec,
                  pl.BlockSpec((9 * C1, Cp), lambda n: (0, 0))],
        out_specs=(act_spec, stats_spec),
        scratch_shapes=[pltpu.VMEM((H + 2, W + 2, C1), jnp.float32),
                        pltpu.VMEM((HW, 9 * C1), jnp.float32)],
        compiler_params=cparams,
    )(y1, scale1, shift1, w2k)

    scale2, shift2 = _fold_bn(st2, g2, b2, count, C2, Cp)

    # --- kernel 3: BN2 + ReLU ----------------------------------------------
    out_p = pl.pallas_call(
        bn_relu_kernel,
        grid=(N,),
        out_shape=jax.ShapeDtypeStruct((N, H, W, Cp), jnp.float32),
        in_specs=[act_spec, vec_spec, vec_spec],
        out_specs=act_spec,
        compiler_params=cparams,
    )(y2, scale2, shift2)

    # Drop the channel padding and return PyTorch NCHW layout.
    return jnp.transpose(out_p[..., :C2], (0, 3, 1, 2))


# ---------------------------------------------------------------------------
# Pure-JAX reference matching torch DoubleConv (train-mode BN, bias=False)
# ---------------------------------------------------------------------------
def reference(x_nchw, w1, w2, g1, b1, g2, b2):
    def conv(x, w):
        return jax.lax.conv_general_dilated(
            x, w, window_strides=(1, 1), padding="SAME",
            dimension_numbers=("NHWC", "HWIO", "NHWC"))

    def bn_relu(y, g, b):
        m = jnp.mean(y, axis=(0, 1, 2), keepdims=True)
        v = jnp.mean((y - m) ** 2, axis=(0, 1, 2), keepdims=True)
        return jnp.maximum((y - m) * jax.lax.rsqrt(v + EPS) * g + b, 0.0)

    x = jnp.transpose(x_nchw, (0, 2, 3, 1))
    h = bn_relu(conv(x, w1), g1, b1)
    o = bn_relu(conv(h, w2), g2, b2)
    return jnp.transpose(o, (0, 3, 1, 2))


if __name__ == "__main__":
    key = jax.random.PRNGKey(0)
    k1, k2, k3, k4, k5, k6, k7 = jax.random.split(key, 7)

    N, Cin, Cout, H, W = 2, 4, 8, 16, 16
    x = jax.random.normal(k1, (N, Cin, H, W), jnp.float32)

    # Conv weights in HWIO layout (kh, kw, cin, cout); bias=False per module.
    w1 = 0.1 * jax.random.normal(k2, (3, 3, Cin, Cout), jnp.float32)
    w2 = 0.1 * jax.random.normal(k3, (3, 3, Cout, Cout), jnp.float32)
    # BatchNorm affine params (gamma, beta) per conv output channel.
    g1 = 1.0 + 0.1 * jax.random.normal(k4, (Cout,), jnp.float32)
    b1 = 0.1 * jax.random.normal(k5, (Cout,), jnp.float32)
    g2 = 1.0 + 0.1 * jax.random.normal(k6, (Cout,), jnp.float32)
    b2 = 0.1 * jax.random.normal(k7, (Cout,), jnp.float32)

    out = double_conv(x, w1, w2, g1, b1, g2, b2)
    jax.block_until_ready(out)
    assert out.shape == (N, Cout, H, W)

    # Tolerance reflects bf16 MXU inputs (f32 accumulation) vs f32 reference.
    ref = reference(x, w1, w2, g1, b1, g2, b2)
    np.testing.assert_allclose(np.asarray(out), np.asarray(ref),
                               atol=4e-2, rtol=4e-2)
    print("KERNEL_OK")
</pallas_src>

<mosaic_0001>
module attributes {stable_mosaic.version = 11 : i64} {
  func.func @conv_stats_kernel(%arg0: i32, %arg1: memref<1x16x16x4xf32, #tpu.memory_space<vmem>>, %arg2: memref<36x128xbf16, #tpu.memory_space<vmem>>, %arg3: memref<1x16x16x128xf32, #tpu.memory_space<vmem>>, %arg4: memref<1x2x128xf32, #tpu.memory_space<vmem>>, %arg5: memref<18x18x4xf32, #tpu.memory_space<vmem>>, %arg6: memref<256x36xf32, #tpu.memory_space<vmem>>) attributes {dimension_semantics = [#tpu.dimension_semantics<parallel>], iteration_bounds = array<i64: 2>, scalar_prefetch = 0 : i64, scratch_operands = 2 : i64, tpu.core_type = #tpu.core_type<tc>, window_params = [{transform_indices = @transform_0, window_bounds = array<i64: 1, 16, 16, 4>}, {pipeline_mode = #tpu.pipeline_mode<synchronous>, transform_indices = @transform_1, window_bounds = array<i64: 36, 128>}, {transform_indices = @transform_2, window_bounds = array<i64: 1, 16, 16, 128>}, {transform_indices = @transform_3, window_bounds = array<i64: 1, 2, 128>}]} {
    %cst = arith.constant 0.000000e+00 : f32
    %0 = vector.broadcast %cst : f32 to vector<1x18x4xf32>
    %cst_0 = arith.constant 0.000000e+00 : f32
    %1 = vector.broadcast %cst_0 : f32 to vector<16x1x4xf32>
    %c0 = arith.constant 0 : index
    %c0_1 = arith.constant 0 : index
    %c0_2 = arith.constant 0 : index
    %2 = vector.load %arg5[%c0, %c0_1, %c0_2] : memref<18x18x4xf32, #tpu.memory_space<vmem>>, vector<1x18x4xf32>
    tpu.vector_store %arg5[%c0, %c0_1, %c0_2], %0 {strides = array<i32>} : memref<18x18x4xf32, #tpu.memory_space<vmem>>, vector<1x18x4xf32>,
    %c17 = arith.constant 17 : index
    %c0_3 = arith.constant 0 : index
    %c0_4 = arith.constant 0 : index
    %3 = vector.load %arg5[%c17, %c0_3, %c0_4] : memref<18x18x4xf32, #tpu.memory_space<vmem>>, vector<1x18x4xf32>
    tpu.vector_store %arg5[%c17, %c0_3, %c0_4], %0 {strides = array<i32>} : memref<18x18x4xf32, #tpu.memory_space<vmem>>, vector<1x18x4xf32>,
    %c1 = arith.constant 1 : index
    %c0_5 = arith.constant 0 : index
    %c0_6 = arith.constant 0 : index
    %4 = vector.load %arg5[%c1, %c0_5, %c0_6] : memref<18x18x4xf32, #tpu.memory_space<vmem>>, vector<16x1x4xf32>
    tpu.vector_store %arg5[%c1, %c0_5, %c0_6], %1 {strides = array<i32>} : memref<18x18x4xf32, #tpu.memory_space<vmem>>, vector<16x1x4xf32>,
    %c1_7 = arith.constant 1 : index
    %c17_8 = arith.constant 17 : index
    %c0_9 = arith.constant 0 : index
    %5 = vector.load %arg5[%c1_7, %c17_8, %c0_9] : memref<18x18x4xf32, #tpu.memory_space<vmem>>, vector<16x1x4xf32>
    tpu.vector_store %arg5[%c1_7, %c17_8, %c0_9], %1 {strides = array<i32>} : memref<18x18x4xf32, #tpu.memory_space<vmem>>, vector<16x1x4xf32>,
    %c0_10 = arith.constant 0 : index
    %c0_11 = arith.constant 0 : index
    %c0_12 = arith.constant 0 : index
    %c0_13 = arith.constant 0 : index
    %6 = vector.load %arg1[%c0_10, %c0_11, %c0_12, %c0_13] : memref<1x16x16x4xf32, #tpu.memory_space<vmem>>, vector<1x16x16x4xf32>
    %7 = vector.shape_cast %6 : vector<1x16x16x4xf32> to vector<16x16x4xf32>
    %c1_14 = arith.constant 1 : index
    %c1_15 = arith.constant 1 : index
    %c0_16 = arith.constant 0 : index
    %8 = vector.load %arg5[%c1_14, %c1_15, %c0_16] : memref<18x18x4xf32, #tpu.memory_space<vmem>>, vector<16x16x4xf32>
    tpu.vector_store %arg5[%c1_14, %c1_15, %c0_16], %7 {strides = array<i32>} : memref<18x18x4xf32, #tpu.memory_space<vmem>>, vector<16x16x4xf32>,
    %c0_17 = arith.constant 0 : index
    %c0_18 = arith.constant 0 : index
    %c0_19 = arith.constant 0 : index
    %9 = vector.load %arg5[%c0_17, %c0_18, %c0_19] : memref<18x18x4xf32, #tpu.memory_space<vmem>>, vector<16x16x4xf32>
    %10 = vector.shape_cast %9 : vector<16x16x4xf32> to vector<256x4xf32>
    %c0_20 = arith.constant 0 : index
    %c0_21 = arith.constant 0 : index
    %11 = vector.load %arg6[%c0_20, %c0_21] : memref<256x36xf32, #tpu.memory_space<vmem>>, vector<256x4xf32>
    tpu.vector_store %arg6[%c0_20, %c0_21], %10 {strides = array<i32>} : memref<256x36xf32, #tpu.memory_space<vmem>>, vector<256x4xf32>,
    %c0_22 = arith.constant 0 : index
    %c1_23 = arith.constant 1 : index
    %c0_24 = arith.constant 0 : index
    %12 = vector.load %arg5[%c0_22, %c1_23, %c0_24] : memref<18x18x4xf32, #tpu.memory_space<vmem>>, vector<16x16x4xf32>
    %13 = vector.shape_cast %12 : vector<16x16x4xf32> to vector<256x4xf32>
    %c0_25 = arith.constant 0 : index
    %c4 = arith.constant 4 : index
    %14 = vector.load %arg6[%c0_25, %c4] : memref<256x36xf32, #tpu.memory_space<vmem>>, vector<256x4xf32>
    tpu.vector_store %arg6[%c0_25, %c4], %13 {strides = array<i32>} : memref<256x36xf32, #tpu.memory_space<vmem>>, vector<256x4xf32>,
    %c0_26 = arith.constant 0 : index
    %c2 = arith.constant 2 : index
    %c0_27 = arith.constant 0 : index
    %15 = vector.load %arg5[%c0_26, %c2, %c0_27] : memref<18x18x4xf32, #tpu.memory_space<vmem>>, vector<16x16x4xf32>
    %16 = vector.shape_cast %15 : vector<16x16x4xf32> to vector<256x4xf32>
    %c0_28 = arith.constant 0 : index
    %c8 = arith.constant 8 : index
    %17 = vector.load %arg6[%c0_28, %c8] : memref<256x36xf32, #tpu.memory_space<vmem>>, vector<256x4xf32>
    tpu.vector_store %arg6[%c0_28, %c8], %16 {strides = array<i32>} : memref<256x36xf32, #tpu.memory_space<vmem>>, vector<256x4xf32>,
    %c1_29 = arith.constant 1 : index
    %c0_30 = arith.constant 0 : index
    %c0_31 = arith.constant 0 : index
    %18 = vector.load %arg5[%c1_29, %c0_30, %c0_31] : memref<18x18x4xf32, #tpu.memory_space<vmem>>, vector<16x16x4xf32>
    %19 = vector.shape_cast %18 : vector<16x16x4xf32> to vector<256x4xf32>
    %c0_32 = arith.constant 0 : index
    %c12 = arith.constant 12 : index
    %20 = vector.load %arg6[%c0_32, %c12] : memref<256x36xf32, #tpu.memory_space<vmem>>, vector<256x4xf32>
    tpu.vector_store %arg6[%c0_32, %c12], %19 {strides = array<i32>} : memref<256x36xf32, #tpu.memory_space<vmem>>, vector<256x4xf32>,
    %c1_33 = arith.constant 1 : index
    %c1_34 = arith.constant 1 : index
    %c0_35 = arith.constant 0 : index
    %21 = vector.load %arg5[%c1_33, %c1_34, %c0_35] : memref<18x18x4xf32, #tpu.memory_space<vmem>>, vector<16x16x4xf32>
    %22 = vector.shape_cast %21 : vector<16x16x4xf32> to vector<256x4xf32>
    %c0_36 = arith.constant 0 : index
    %c16 = arith.constant 16 : index
    %23 = vector.load %arg6[%c0_36, %c16] : memref<256x36xf32, #tpu.memory_space<vmem>>, vector<256x4xf32>
    tpu.vector_store %arg6[%c0_36, %c16], %22 {strides = array<i32>} : memref<256x36xf32, #tpu.memory_space<vmem>>, vector<256x4xf32>,
    %c1_37 = arith.constant 1 : index
    %c2_38 = arith.constant 2 : index
    %c0_39 = arith.constant 0 : index
    %24 = vector.load %arg5[%c1_37, %c2_38, %c0_39] : memref<18x18x4xf32, #tpu.memory_space<vmem>>, vector<16x16x4xf32>
    %25 = vector.shape_cast %24 : vector<16x16x4xf32> to vector<256x4xf32>
    %c0_40 = arith.constant 0 : index
    %c20 = arith.constant 20 : index
    %26 = vector.load %arg6[%c0_40, %c20] : memref<256x36xf32, #tpu.memory_space<vmem>>, vector<256x4xf32>
    tpu.vector_store %arg6[%c0_40, %c20], %25 {strides = array<i32>} : memref<256x36xf32, #tpu.memory_space<vmem>>, vector<256x4xf32>,
    %c2_41 = arith.constant 2 : index
    %c0_42 = arith.constant 0 : index
    %c0_43 = arith.constant 0 : index
    %27 = vector.load %arg5[%c2_41, %c0_42, %c0_43] : memref<18x18x4xf32, #tpu.memory_space<vmem>>, vector<16x16x4xf32>
    %28 = vector.shape_cast %27 : vector<16x16x4xf32> to vector<256x4xf32>
    %c0_44 = arith.constant 0 : index
    %c24 = arith.constant 24 : index
    %29 = vector.load %arg6[%c0_44, %c24] : memref<256x36xf32, #tpu.memory_space<vmem>>, vector<256x4xf32>
    tpu.vector_store %arg6[%c0_44, %c24], %28 {strides = array<i32>} : memref<256x36xf32, #tpu.memory_space<vmem>>, vector<256x4xf32>,
    %c2_45 = arith.constant 2 : index
    %c1_46 = arith.constant 1 : index
    %c0_47 = arith.constant 0 : index
    %30 = vector.load %arg5[%c2_45, %c1_46, %c0_47] : memref<18x18x4xf32, #tpu.memory_space<vmem>>, vector<16x16x4xf32>
    %31 = vector.shape_cast %30 : vector<16x16x4xf32> to vector<256x4xf32>
    %c0_48 = arith.constant 0 : index
    %c28 = arith.constant 28 : index
    %32 = vector.load %arg6[%c0_48, %c28] : memref<256x36xf32, #tpu.memory_space<vmem>>, vector<256x4xf32>
    tpu.vector_store %arg6[%c0_48, %c28], %31 {strides = array<i32>} : memref<256x36xf32, #tpu.memory_space<vmem>>, vector<256x4xf32>,
    %c2_49 = arith.constant 2 : index
    %c2_50 = arith.constant 2 : index
    %c0_51 = arith.constant 0 : index
    %33 = vector.load %arg5[%c2_49, %c2_50, %c0_51] : memref<18x18x4xf32, #tpu.memory_space<vmem>>, vector<16x16x4xf32>
    %34 = vector.shape_cast %33 : vector<16x16x4xf32> to vector<256x4xf32>
    %c0_52 = arith.constant 0 : index
    %c32 = arith.constant 32 : index
    %35 = vector.load %arg6[%c0_52, %c32] : memref<256x36xf32, #tpu.memory_space<vmem>>, vector<256x4xf32>
    tpu.vector_store %arg6[%c0_52, %c32], %34 {strides = array<i32>} : memref<256x36xf32, #tpu.memory_space<vmem>>, vector<256x4xf32>,
    %c0_53 = arith.constant 0 : index
    %c0_54 = arith.constant 0 : index
    %36 = vector.load %arg6[%c0_53, %c0_54] : memref<256x36xf32, #tpu.memory_space<vmem>>, vector<256x36xf32>
    %37 = arith.truncf %36 : vector<256x36xf32> to vector<256x36xbf16>
    %c0_55 = arith.constant 0 : index
    %c0_56 = arith.constant 0 : index
    %38 = vector.load %arg2[%c0_55, %c0_56] : memref<36x128xbf16, #tpu.memory_space<vmem>>, vector<36x128xbf16>
    %cst_57 = arith.constant dense<0.000000e+00> : vector<256x128xf32>
    %39 = tpu.matmul %37, %38, %cst_57 {dimension_numbers = #tpu.dot_dimension_numbers<[1], [0], [0], [1], [0, 0, 1, 1], [], []>} : vector<256x36xbf16>, vector<36x128xbf16>, vector<256x128xf32> -> vector<256x128xf32>
    %cst_58 = arith.constant dense<0.000000e+00> : vector<128xf32>
    %40 = vector.multi_reduction <add>, %39, %cst_58 [0] : vector<256x128xf32> to vector<128xf32>
    %41 = vector.shape_cast %40 : vector<128xf32> to vector<1x128xf32>
    %42 = vector.shape_cast %41 : vector<1x128xf32> to vector<1x1x128xf32>
    %c0_59 = arith.constant 0 : index
    %c0_60 = arith.constant 0 : index
    %c0_61 = arith.constant 0 : index
    %43 = vector.load %arg4[%c0_59, %c0_60, %c0_61] : memref<1x2x128xf32, #tpu.memory_space<vmem>>, vector<1x1x128xf32>
    tpu.vector_store %arg4[%c0_59, %c0_60, %c0_61], %42 {strides = array<i32>} : memref<1x2x128xf32, #tpu.memory_space<vmem>>, vector<1x1x128xf32>,
    %44 = arith.mulf %39, %39 : vector<256x128xf32>
    %cst_62 = arith.constant dense<0.000000e+00> : vector<128xf32>
    %45 = vector.multi_reduction <add>, %44, %cst_62 [0] : vector<256x128xf32> to vector<128xf32>
    %46 = vector.shape_cast %45 : vector<128xf32> to vector<1x128xf32>
    %47 = vector.shape_cast %46 : vector<1x128xf32> to vector<1x1x128xf32>
    %c0_63 = arith.constant 0 : index
    %c1_64 = arith.constant 1 : index
    %c0_65 = arith.constant 0 : index
    %48 = vector.load %arg4[%c0_63, %c1_64, %c0_65] : memref<1x2x128xf32, #tpu.memory_space<vmem>>, vector<1x1x128xf32>
    tpu.vector_store %arg4[%c0_63, %c1_64, %c0_65], %47 {strides = array<i32>} : memref<1x2x128xf32, #tpu.memory_space<vmem>>, vector<1x1x128xf32>,
    %49 = vector.shape_cast %39 : vector<256x128xf32> to vector<1x16x16x128xf32>
    %c0_66 = arith.constant 0 : index
    %c0_67 = arith.constant 0 : index
    %c0_68 = arith.constant 0 : index
    %c0_69 = arith.constant 0 : index
    %50 = vector.load %arg3[%c0_66, %c0_67, %c0_68, %c0_69] : memref<1x16x16x128xf32, #tpu.memory_space<vmem>>, vector<1x16x16x128xf32>
    tpu.vector_store %arg3[%c0_66, %c0_67, %c0_68, %c0_69], %49 {strides = array<i32>} : memref<1x16x16x128xf32, #tpu.memory_space<vmem>>, vector<1x16x16x128xf32>,
    return
  }
  func.func @transform_0(%arg0: i32) -> (i32, i32, i32, i32) {
    %c0_i32 = arith.constant 0 : i32
    %c0_i32_0 = arith.constant 0 : i32
    %c0_i32_1 = arith.constant 0 : i32
    %c0_i32_2 = arith.constant 0 : i32
    return %arg0, %c0_i32, %c0_i32_0, %c0_i32_1 : i32, i32, i32, i32
  }
  func.func @transform_1(%arg0: i32) -> (i32, i32) {
    %c0_i32 = arith.constant 0 : i32
    %c0_i32_0 = arith.constant 0 : i32
    %c0_i32_1 = arith.constant 0 : i32
    return %c0_i32, %c0_i32_0 : i32, i32
  }
  func.func @transform_2(%arg0: i32) -> (i32, i32, i32, i32) {
    %c0_i32 = arith.constant 0 : i32
    %c0_i32_0 = arith.constant 0 : i32
    %c0_i32_1 = arith.constant 0 : i32
    %c0_i32_2 = arith.constant 0 : i32
    return %arg0, %c0_i32, %c0_i32_0, %c0_i32_1 : i32, i32, i32, i32
  }
  func.func @transform_3(%arg0: i32) -> (i32, i32, i32) {
    %c0_i32 = arith.constant 0 : i32
    %c0_i32_0 = arith.constant 0 : i32
    %c0_i32_1 = arith.constant 0 : i32
    return %arg0, %c0_i32, %c0_i32_0 : i32, i32, i32
  }
}

</mosaic_0001>

<llo_original>
// kernel: tpu_custom_call.1
$region0: #{tpu_custom_call.1}
  #allocation0 [shape = 'u32[]', space=smem, size = 0x4, offset = 0x4, fixed_abs, tag = 'smem constant byte address 0x4 - core index']
  #allocation1 [shape = 'u32[144,128]{1,0:T(1,128)}', space=vmem, size = 0x12000, scoped, tag = 'internal scratch']
  #allocation2 [shape = 'f32[18,18,4]{2,1,0:T(8,128)}', space=vmem, size = 0x36000, scoped, tag = 'scratch operand']
  #allocation3 [shape = 'f32[256,36]{1,0:T(8,128)}', space=vmem, size = 0x20000, scoped, tag = 'scratch operand']
  %s0 = inlined_call_operand.vmem [shape: f32[2,16,16,4], index: 0, kind: input, shape index: {}]
  %s1 = inlined_call_operand.vmem [shape: bf16[36,128], index: 1, kind: input, shape index: {}]
  %s2 = inlined_call_operand.hbm [shape: f32[2,16,16,128], index: 2, kind: output, shape index: {0}]
  %s3 = inlined_call_operand.hbm [shape: f32[2,2,128], index: 3, kind: output, shape index: {1}]
  %4 = xla_tuple %s2, %s3
  %s5 = sld [smem:[#allocation0]]
  $region49: #{tpu_custom_call.1} parent=0
    _
  %s7 = ssub.s32 1, %s5
  %s8 = scalar_select 0, %s7, %s5
  $region1: #{tpu_custom_call.1} parent=0
    #allocation4 [shape = 'u8[262144]{0}', space=vmem, size = 0x40000, scoped, tag = 'output window, operand 0']
    #allocation5 [shape = 's32[2]{0}', space=sflag, size = 0x8, scoped, tag = 'scoped memory for tpu_custom_call.1']
    #allocation6 [shape = 'u8[2048]{0}', space=vmem, size = 0x800, scoped, tag = 'output window, operand 1']
    #allocation7 [shape = 's32[2]{0}', space=sflag, size = 0x8, scoped, tag = 'scoped memory for tpu_custom_call.1']
    %9 = vsyncpa [#allocation5], 0
    %s10 = scalar_lea.sflag [#allocation5], 1
    %11 = vsyncpa %s10, 0
    %12 = vsyncpa [#allocation7], 0
    %s13 = scalar_lea.sflag [#allocation7], 1
    %14 = vsyncpa %s13, 0
    loop: start=0, step=1, limit=4
    $region2: #{tpu_custom_call.1} parent=1 // loop_pre_header
      _
    $region3: #{tpu_custom_call.1} parent=1 // loop_header
      %s16 = sphi 0, %s20
      %p17 = scmp.ge.s32.totalorder %s16, 4
      %s26 = sphi 0, %s28
      %s29 = sphi 0, %s26
      %s30 = sphi 0, %s29
      %s46 = sphi 0, %s30
      %s50 = sphi 0, %s50
      %s52 = sphi 0, %s50
      %s53 = sphi 0, %s52
      %s67 = sphi 0, %s53
      %s73 = sphi 0, %s75
      %s76 = sphi 0, %s73
      %s77 = sphi 0, %s76
      %s93 = sphi 0, %s77
      %s99 = sphi 0, %s101
      %s102 = sphi 0, %s99
      %s103 = sphi 0, %s102
      %s119 = sphi 0, %s103
    $region4: #{tpu_custom_call.1} parent=1 // loop_header_branch
      %19 = sbr.rel (%p17) target = $region8
    $region5: #{tpu_custom_call.1} parent=1 // loop_body
      %s21 = ssub.s32 %s16, 1
      %s22 = ssub.s32 %s16, 2
      %s23 = sadd.s32 %s16, 1
      %s24 = ssub.s32 %s16, %s23
      %p25 = scmp.eq.s32.totalorder %s24, 0
      %s27 = sadd.s32 %s26, 1
      %s28 = scalar_select %p25, %s26, %s27
      %p31 = pneg %p25
      %p32 = scmp.eq.s32.totalorder %s16, 1
      %p33 = por %p31, %p32
      %p34 = scmp.ne.s32.totalorder %s26, %s29
      %p35 = scmp.eq.s32.totalorder %s16, 0
      %p36 = por %p34, %p35
      %p37 = scmp.ne.s32.totalorder %s26, %s29
      %p38 = scmp.eq.s32.totalorder %s21, 1
      %p39 = por %p37, %p38
      %p40 = scmp.ne.s32.totalorder %s29, %s30
      %p41 = scmp.eq.s32.totalorder %s21, 0
      %p42 = por %p40, %p41
      %p43 = scmp.ne.s32.totalorder %s29, %s30
      %p44 = scmp.eq.s32.totalorder %s22, 1
      %p45 = por %p43, %p44
      %p47 = scmp.ne.s32.totalorder %s30, %s46
      %p48 = scmp.eq.s32.totalorder %s22, 0
      %p49 = por %p47, %p48
      %s51 = sadd.s32 %s50, 1
      %p54 = scmp.eq.s32.totalorder %s16, 1
      %p55 = scmp.ne.s32.totalorder %s50, %s52
      %p56 = scmp.eq.s32.totalorder %s16, 0
      %p57 = por %p55, %p56
      %p58 = scmp.ne.s32.totalorder %s50, %s52
      %p59 = scmp.eq.s32.totalorder %s21, 1
      %p60 = por %p58, %p59
      %p61 = scmp.ne.s32.totalorder %s52, %s53
      %p62 = scmp.eq.s32.totalorder %s21, 0
      %p63 = por %p61, %p62
      %p64 = scmp.ne.s32.totalorder %s52, %s53
      %p65 = scmp.eq.s32.totalorder %s22, 1
      %p66 = por %p64, %p65
      %p68 = scmp.ne.s32.totalorder %s53, %s67
      %p69 = scmp.eq.s32.totalorder %s22, 0
      %p70 = por %p68, %p69
      %s71 = ssub.s32 %s16, %s23
      %p72 = scmp.eq.s32.totalorder %s71, 0
      %s74 = sadd.s32 %s73, 1
      %s75 = scalar_select %p72, %s73, %s74
      %p78 = pneg %p72
      %p79 = scmp.eq.s32.totalorder %s16, 1
      %p80 = por %p78, %p79
      %p81 = scmp.ne.s32.totalorder %s73, %s76
      %p82 = scmp.eq.s32.totalorder %s16, 0
      %p83 = por %p81, %p82
      %p84 = scmp.ne.s32.totalorder %s73, %s76
      %p85 = scmp.eq.s32.totalorder %s21, 1
      %p86 = por %p84, %p85
      %p87 = scmp.ne.s32.totalorder %s76, %s77
      %p88 = scmp.eq.s32.totalorder %s21, 0
      %p89 = por %p87, %p88
      %p90 = scmp.ne.s32.totalorder %s76, %s77
      %p91 = scmp.eq.s32.totalorder %s22, 1
      %p92 = por %p90, %p91
      %p94 = scmp.ne.s32.totalorder %s77, %s93
      %p95 = scmp.eq.s32.totalorder %s22, 0
      %p96 = por %p94, %p95
      %s97 = ssub.s32 %s16, %s23
      %p98 = scmp.eq.s32.totalorder %s97, 0
      %s100 = sadd.s32 %s99, 1
      %s101 = scalar_select %p98, %s99, %s100
      %p104 = pneg %p98
      %p105 = scmp.eq.s32.totalorder %s16, 1
      %p106 = por %p104, %p105
      %p107 = scmp.ne.s32.totalorder %s99, %s102
      %p108 = scmp.eq.s32.totalorder %s16, 0
      %p109 = por %p107, %p108
      %p110 = scmp.ne.s32.totalorder %s99, %s102
      %p111 = scmp.eq.s32.totalorder %s21, 1
      %p112 = por %p110, %p111
      %p113 = scmp.ne.s32.totalorder %s102, %s103
      %p114 = scmp.eq.s32.totalorder %s21, 0
      %p115 = por %p113, %p114
      %p116 = scmp.ne.s32.totalorder %s102, %s103
      %p117 = scmp.eq.s32.totalorder %s22, 1
      %p118 = por %p116, %p117
      %p120 = scmp.ne.s32.totalorder %s103, %s119
      %p121 = scmp.eq.s32.totalorder %s22, 0
      %p122 = por %p120, %p121
      %p123 = scmp.le.s32.totalorder 1, %s16
      %p124 = scmp.lt.s32.totalorder %s16, 3
      %p125 = pnand %p123, %p124
      %p126 = pneg %p125
      // Predicated region
      $region9: #{tpu_custom_call.1} parent=5 // pred_check
        _
      $region10: #{tpu_custom_call.1} parent=5 // pred_check_branch
        %128 = sbr.rel (%p125) target = $region12
      $region11: #{tpu_custom_call.1} parent=5 // pred_region
        %s129 = ssub.s32 %s16, 1
        // Predicated region
        $region13: #{tpu_custom_call.1} parent=11 // pred_check
          %p130 = pneg %p63
        $region14: #{tpu_custom_call.1} parent=11 // pred_check_branch
          %132 = sbr.rel (%p130) target = $region16
        $region15: #{tpu_custom_call.1} parent=11 // pred_region
          _
        $region16: #{tpu_custom_call.1} parent=11 // pred_fallthru
          _
      $region12: #{tpu_custom_call.1} parent=5 // pred_fallthru
        _
      %p133 = scmp.lt.s32.totalorder %s16, 2
      // Predicated region
      $region17: #{tpu_custom_call.1} parent=5 // pred_check
        %p134 = pneg %p133
      $region18: #{tpu_custom_call.1} parent=5 // pred_check_branch
        %136 = sbr.rel (%p134) target = $region20
      $region19: #{tpu_custom_call.1} parent=5 // pred_region
        // Predicated region
        $region21: #{tpu_custom_call.1} parent=19 // pred_check
          %p137 = pneg %p36
        $region22: #{tpu_custom_call.1} parent=19 // pred_check_branch
          %139 = sbr.rel (%p137) target = $region24
        $region23: #{tpu_custom_call.1} parent=19 // pred_region
          %p140 = scmp.lt.s32.totalorder %s16, 1
          %s141 = scalar_select %p140, %s16, 1
          %s142 = smul.addr %s141, 32
          %s143 = smul.addr %s142, 8
          %s144 = scalar_lea.vmem %s0, %s143
        $region24: #{tpu_custom_call.1} parent=19 // pred_fallthru
          _
      $region20: #{tpu_custom_call.1} parent=5 // pred_fallthru
        _
      %p145 = scmp.le.s32.totalorder 1, %s16
      %p146 = scmp.lt.s32.totalorder %s16, 3
      %p147 = pnand %p145, %p146
      %p148 = pneg %p147
      // Predicated region
      $region25: #{tpu_custom_call.1} parent=5 // pred_check
        _
      $region26: #{tpu_custom_call.1} parent=5 // pred_check_branch
        %150 = sbr.rel (%p147) target = $region28
      $region27: #{tpu_custom_call.1} parent=5 // pred_region
        %s151 = ssub.s32 %s16, 1
        %p152 = scmp.lt.s32.totalorder %s21, 1
        %s153 = scalar_select %p152, %s21, 1
        %s154 = smul.addr %s153, 32
        %s155 = smul.addr %s154, 8
        %s156 = scalar_lea.vmem %s0, %s155
        %p157 = pneg %p42
        %p158 = pneg %p39
        %p159 = pneg %p63
        %p160 = pneg %p60
        %p161 = pneg %p89
        %p162 = pneg %p86
        %s163 = sand.u32 %s76, 1
        %s164 = scalar_lea.sflag [#allocation5], %s163
        %s165 = sand.u32 %s76, 1
        %s166 = smul.addr %s165, 256
        %s167 = scalar_lea.vmem [#allocation4], %s166
        %p168 = pneg %p115
        %p169 = pneg %p112
        %s170 = sand.u32 %s102, 1
        %s171 = scalar_lea.sflag [#allocation7], %s170
        %s172 = sand.u32 %s102, 1
        %s173 = smul.addr %s172, 2
        %s174 = scalar_lea.vmem [#allocation6], %s173
        %p175 = scmp.lt.s32.totalorder %s21, 1
        %s176 = scalar_select %p175, %s21, 1
        %s177 = smul.addr %s176, 32
        %s178 = smul.addr %s177, 8
        %s179 = scalar_lea.vmem %s0, %s178
        %vm181 = vcmask 31744
        %182 = vst.msk [vmem:[#allocation2] sm:$0xff] %vm181, 0.0
        %183 = vst.msk [vmem:[#allocation2 + $0x8] sm:$0xff] %vm181, 0.0
        %vm184 = vcmask 25600
        %185 = vst.msk [vmem:[#allocation2 + $0x10] sm:$0x3] %vm184, 0.0
        %s186 = scalar_lea.vmem [#allocation2], 408
        %187 = vst.msk [vmem:[%s186] sm:$0xff] %vm181, 0.0
        %188 = vst.msk [vmem:[%s186 + $0x8] sm:$0xff] %vm181, 0.0
        %189 = vst.msk [vmem:[%s186 + $0x10] sm:$0x3] %vm184, 0.0
        %s190 = scalar_lea.vmem [#allocation2], 24
        %vm191 = vcmask 24576
        %192 = vst.msk [vmem:[%s190] sm:$0x1] %vm191, 0.0
        %193 = vst.msk [vmem:[%s190 + $0x18] sm:$0x1] %vm191, 0.0
        %194 = vst.msk [vmem:[%s190 + $0x30] sm:$0x1] %vm191, 0.0
        %195 = vst.msk [vmem:[%s190 + $0x48] sm:$0x1] %vm191, 0.0
        %196 = vst.msk [vmem:[%s190 + $0x60] sm:$0x1] %vm191, 0.0
        %197 = vst.msk [vmem:[%s190 + $0x78] sm:$0x1] %vm191, 0.0
        %198 = vst.msk [vmem:[%s190 + $0x90] sm:$0x1] %vm191, 0.0
        %199 = vst.msk [vmem:[%s190 + $0xa8] sm:$0x1] %vm191, 0.0
        %200 = vst.msk [vmem:[%s190 + $0xc0] sm:$0x1] %vm191, 0.0
        %201 = vst.msk [vmem:[%s190 + $0xd8] sm:$0x1] %vm191, 0.0
        %202 = vst.msk [vmem:[%s190 + $0xf0] sm:$0x1] %vm191, 0.0
        %203 = vst.msk [vmem:[%s190 + $0x108] sm:$0x1] %vm191, 0.0
        %204 = vst.msk [vmem:[%s190 + $0x120] sm:$0x1] %vm191, 0.0
        %205 = vst.msk [vmem:[%s190 + $0x138] sm:$0x1] %vm191, 0.0
        %206 = vst.msk [vmem:[%s190 + $0x150] sm:$0x1] %vm191, 0.0
        %207 = vst.msk [vmem:[%s190 + $0x168] sm:$0x1] %vm191, 0.0
        %208 = vst.msk [vmem:[%s190 + $0x11] sm:$0x1] %vm191, 0.0
        %209 = vst.msk [vmem:[%s190 + $0x29] sm:$0x1] %vm191, 0.0
        %210 = vst.msk [vmem:[%s190 + $0x41] sm:$0x1] %vm191, 0.0
        %211 = vst.msk [vmem:[%s190 + $0x59] sm:$0x1] %vm191, 0.0
        %212 = vst.msk [vmem:[%s190 + $0x71] sm:$0x1] %vm191, 0.0
        %213 = vst.msk [vmem:[%s190 + $0x89] sm:$0x1] %vm191, 0.0
        %214 = vst.msk [vmem:[%s190 + $0xa1] sm:$0x1] %vm191, 0.0
        %215 = vst.msk [vmem:[%s190 + $0xb9] sm:$0x1] %vm191, 0.0
        %216 = vst.msk [vmem:[%s190 + $0xd1] sm:$0x1] %vm191, 0.0
        %217 = vst.msk [vmem:[%s190 + $0xe9] sm:$0x1] %vm191, 0.0
        %218 = vst.msk [vmem:[%s190 + $0x101] sm:$0x1] %vm191, 0.0
        %219 = vst.msk [vmem:[%s190 + $0x119] sm:$0x1] %vm191, 0.0
        %220 = vst.msk [vmem:[%s190 + $0x131] sm:$0x1] %vm191, 0.0
        %221 = vst.msk [vmem:[%s190 + $0x149] sm:$0x1] %vm191, 0.0
        %222 = vst.msk [vmem:[%s190 + $0x161] sm:$0x1] %vm191, 0.0
        %223 = vst.msk [vmem:[%s190 + $0x179] sm:$0x1] %vm191, 0.0
        %v224 = vld [vmem:[%s179] sm:$0xff]
        %v225 = vld [vmem:[%s179 + $0x8] sm:$0xff]
        %v226 = vld [vmem:[%s179 + $0x10] sm:$0xff]
        %v227 = vld [vmem:[%s179 + $0x18] sm:$0xff]
        %v228 = vld [vmem:[%s179 + $0x20] sm:$0xff]
        %v229 = vld [vmem:[%s179 + $0x28] sm:$0xff]
        %v230 = vld [vmem:[%s179 + $0x30] sm:$0xff]
        %v231 = vld [vmem:[%s179 + $0x38] sm:$0xff]
        %v232 = vld [vmem:[%s179 + $0x40] sm:$0xff]
        %v233 = vld [vmem:[%s179 + $0x48] sm:$0xff]
        %v234 = vld [vmem:[%s179 + $0x50] sm:$0xff]
        %v235 = vld [vmem:[%s179 + $0x58] sm:$0xff]
        %v236 = vld [vmem:[%s179 + $0x60] sm:$0xff]
        %v237 = vld [vmem:[%s179 + $0x68] sm:$0xff]
        %v238 = vld [vmem:[%s179 + $0x70] sm:$0xff]
        %v239 = vld [vmem:[%s179 + $0x78] sm:$0xff]
        %v240 = vld [vmem:[%s179 + $0x80] sm:$0xff]
        %v241 = vld [vmem:[%s179 + $0x88] sm:$0xff]
        %v242 = vld [vmem:[%s179 + $0x90] sm:$0xff]
        %v243 = vld [vmem:[%s179 + $0x98] sm:$0xff]
        %v244 = vld [vmem:[%s179 + $0xa0] sm:$0xff]
        %v245 = vld [vmem:[%s179 + $0xa8] sm:$0xff]
        %v246 = vld [vmem:[%s179 + $0xb0] sm:$0xff]
        %v247 = vld [vmem:[%s179 + $0xb8] sm:$0xff]
        %v248 = vld [vmem:[%s179 + $0xc0] sm:$0xff]
        %v249 = vld [vmem:[%s179 + $0xc8] sm:$0xff]
        %v250 = vld [vmem:[%s179 + $0xd0] sm:$0xff]
        %v251 = vld [vmem:[%s179 + $0xd8] sm:$0xff]
        %v252 = vld [vmem:[%s179 + $0xe0] sm:$0xff]
        %v253 = vld [vmem:[%s179 + $0xe8] sm:$0xff]
        %v254 = vld [vmem:[%s179 + $0xf0] sm:$0xff]
        %v255 = vld [vmem:[%s179 + $0xf8] sm:$0xff]
        %256 = vst.msk [vmem:[%s190 + $0x1] sm:$0xff] %vm181, %v224
        %257 = vst.msk [vmem:[%s190 + $0x9] sm:$0xff] %vm181, %v225
        %258 = vst.msk [vmem:[%s190 + $0x19] sm:$0xff] %vm181, %v226
        %259 = vst.msk [vmem:[%s190 + $0x21] sm:$0xff] %vm181, %v227
        %260 = vst.msk [vmem:[%s190 + $0x31] sm:$0xff] %vm181, %v228
        %261 = vst.msk [vmem:[%s190 + $0x39] sm:$0xff] %vm181, %v229
        %262 = vst.msk [vmem:[%s190 + $0x49] sm:$0xff] %vm181, %v230
        %263 = vst.msk [vmem:[%s190 + $0x51] sm:$0xff] %vm181, %v231
        %264 = vst.msk [vmem:[%s190 + $0x61] sm:$0xff] %vm181, %v232
        %265 = vst.msk [vmem:[%s190 + $0x69] sm:$0xff] %vm181, %v233
        %266 = vst.msk [vmem:[%s190 + $0x79] sm:$0xff] %vm181, %v234
        %267 = vst.msk [vmem:[%s190 + $0x81] sm:$0xff] %vm181, %v235
        %268 = vst.msk [vmem:[%s190 + $0x91] sm:$0xff] %vm181, %v236
        %269 = vst.msk [vmem:[%s190 + $0x99] sm:$0xff] %vm181, %v237
        %270 = vst.msk [vmem:[%s190 + $0xa9] sm:$0xff] %vm181, %v238
        %271 = vst.msk [vmem:[%s190 + $0xb1] sm:$0xff] %vm181, %v239
        %272 = vst.msk [vmem:[%s190 + $0xc1] sm:$0xff] %vm181, %v240
        %273 = vst.msk [vmem:[%s190 + $0xc9] sm:$0xff] %vm181, %v241
        %274 = vst.msk [vmem:[%s190 + $0xd9] sm:$0xff] %vm181, %v242
        %275 = vst.msk [vmem:[%s190 + $0xe1] sm:$0xff] %vm181, %v243
        %276 = vst.msk [vmem:[%s190 + $0xf1] sm:$0xff] %vm181, %v244
        %277 = vst.msk [vmem:[%s190 + $0xf9] sm:$0xff] %vm181, %v245
        %278 = vst.msk [vmem:[%s190 + $0x109] sm:$0xff] %vm181, %v246
        %279 = vst.msk [vmem:[%s190 + $0x111] sm:$0xff] %vm181, %v247
        %280 = vst.msk [vmem:[%s190 + $0x121] sm:$0xff] %vm181, %v248
        %281 = vst.msk [vmem:[%s190 + $0x129] sm:$0xff] %vm181, %v249
        %282 = vst.msk [vmem:[%s190 + $0x139] sm:$0xff] %vm181, %v250
        %283 = vst.msk [vmem:[%s190 + $0x141] sm:$0xff] %vm181, %v251
        %284 = vst.msk [vmem:[%s190 + $0x151] sm:$0xff] %vm181, %v252
        %285 = vst.msk [vmem:[%s190 + $0x159] sm:$0xff] %vm181, %v253
        %286 = vst.msk [vmem:[%s190 + $0x169] sm:$0xff] %vm181, %v254
        %287 = vst.msk [vmem:[%s190 + $0x171] sm:$0xff] %vm181, %v255
        %v288 = vld [vmem:[#allocation2] sm:$0xff]
        %v289 = vld [vmem:[#allocation2 + $0x8] sm:$0xff]
        %v290 = vld [vmem:[#allocation2 + $0x18] sm:$0xff]
        %v291 = vld [vmem:[#allocation2 + $0x20] sm:$0xff]
        %v292 = vld [vmem:[#allocation2 + $0x30] sm:$0xff]
        %v293 = vld [vmem:[#allocation2 + $0x38] sm:$0xff]
        %v294 = vld [vmem:[#allocation2 + $0x48] sm:$0xff]
        %v295 = vld [vmem:[#allocation2 + $0x50] sm:$0xff]
        %v296 = vld [vmem:[#allocation2 + $0x60] sm:$0xff]
        %v297 = vld [vmem:[#allocation2 + $0x68] sm:$0xff]
        %v298 = vld [vmem:[#allocation2 + $0x78] sm:$0xff]
        %v299 = vld [vmem:[#allocation2 + $0x80] sm:$0xff]
        %v300 = vld [vmem:[#allocation2 + $0x90] sm:$0xff]
        %v301 = vld [vmem:[#allocation2 + $0x98] sm:$0xff]
        %v302 = vld [vmem:[#allocation2 + $0xa8] sm:$0xff]
        %v303 = vld [vmem:[#allocation2 + $0xb0] sm:$0xff]
        %v304 = vld [vmem:[#allocation2 + $0xc0] sm:$0xff]
        %v305 = vld [vmem:[#allocation2 + $0xc8] sm:$0xff]
        %v306 = vld [vmem:[#allocation2 + $0xd8] sm:$0xff]
        %v307 = vld [vmem:[#allocation2 + $0xe0] sm:$0xff]
        %v308 = vld [vmem:[#allocation2 + $0xf0] sm:$0xff]
        %v309 = vld [vmem:[#allocation2 + $0xf8] sm:$0xff]
        %v310 = vld [vmem:[#allocation2 + $0x108] sm:$0xff]
        %v311 = vld [vmem:[#allocation2 + $0x110] sm:$0xff]
        %v312 = vld [vmem:[#allocation2 + $0x120] sm:$0xff]
        %v313 = vld [vmem:[#allocation2 + $0x128] sm:$0xff]
        %v314 = vld [vmem:[#allocation2 + $0x138] sm:$0xff]
        %v315 = vld [vmem:[#allocation2 + $0x140] sm:$0xff]
        %v316 = vld [vmem:[#allocation2 + $0x150] sm:$0xff]
        %v317 = vld [vmem:[#allocation2 + $0x158] sm:$0xff]
        %v318 = vld [vmem:[#allocation2 + $0x168] sm:$0xff]
        %v319 = vld [vmem:[#allocation2 + $0x170] sm:$0xff]
        %320 = vst.msk [vmem:[#allocation3] sm:$0xff] %vm181, %v288
        %321 = vst.msk [vmem:[#allocation3 + $0x8] sm:$0xff] %vm181, %v289
        %322 = vst.msk [vmem:[#allocation3 + $0x10] sm:$0xff] %vm181, %v290
        %323 = vst.msk [vmem:[#allocation3 + $0x18] sm:$0xff] %vm181, %v291
        %324 = vst.msk [vmem:[#allocation3 + $0x20] sm:$0xff] %vm181, %v292
        %325 = vst.msk [vmem:[#allocation3 + $0x28] sm:$0xff] %vm181, %v293
        %326 = vst.msk [vmem:[#allocation3 + $0x30] sm:$0xff] %vm181, %v294
        %327 = vst.msk [vmem:[#allocation3 + $0x38] sm:$0xff] %vm181, %v295
        %328 = vst.msk [vmem:[#allocation3 + $0x40] sm:$0xff] %vm181, %v296
        %329 = vst.msk [vmem:[#allocation3 + $0x48] sm:$0xff] %vm181, %v297
        %330 = vst.msk [vmem:[#allocation3 + $0x50] sm:$0xff] %vm181, %v298
        %331 = vst.msk [vmem:[#allocation3 + $0x58] sm:$0xff] %vm181, %v299
        %332 = vst.msk [vmem:[#allocation3 + $0x60] sm:$0xff] %vm181, %v300
        %333 = vst.msk [vmem:[#allocation3 + $0x68] sm:$0xff] %vm181, %v301
        %334 = vst.msk [vmem:[#allocation3 + $0x70] sm:$0xff] %vm181, %v302
        %335 = vst.msk [vmem:[#allocation3 + $0x78] sm:$0xff] %vm181, %v303
        %336 = vst.msk [vmem:[#allocation3 + $0x80] sm:$0xff] %vm181, %v304
        %337 = vst.msk [vmem:[#allocation3 + $0x88] sm:$0xff] %vm181, %v305
        %338 = vst.msk [vmem:[#allocation3 + $0x90] sm:$0xff] %vm181, %v306
        %339 = vst.msk [vmem:[#allocation3 + $0x98] sm:$0xff] %vm181, %v307
        %340 = vst.msk [vmem:[#allocation3 + $0xa0] sm:$0xff] %vm181, %v308
        %341 = vst.msk [vmem:[#allocation3 + $0xa8] sm:$0xff] %vm181, %v309
        %342 = vst.msk [vmem:[#allocation3 + $0xb0] sm:$0xff] %vm181, %v310
        %343 = vst.msk [vmem:[#allocation3 + $0xb8] sm:$0xff] %vm181, %v311
        %344 = vst.msk [vmem:[#allocation3 + $0xc0] sm:$0xff] %vm181, %v312
        %345 = vst.msk [vmem:[#allocation3 + $0xc8] sm:$0xff] %vm181, %v313
        %346 = vst.msk [vmem:[#allocation3 + $0xd0] sm:$0xff] %vm181, %v314
        %347 = vst.msk [vmem:[#allocation3 + $0xd8] sm:$0xff] %vm181, %v315
        %348 = vst.msk [vmem:[#allocation3 + $0xe0] sm:$0xff] %vm181, %v316
        %349 = vst.msk [vmem:[#allocation3 + $0xe8] sm:$0xff] %vm181, %v317
        %350 = vst.msk [vmem:[#allocation3 + $0xf0] sm:$0xff] %vm181, %v318
        %351 = vst.msk [vmem:[#allocation3 + $0xf8] sm:$0xff] %vm181, %v319
        %v352 = vld [vmem:[#allocation2 + $0x1] sm:$0xff]
        %v353 = vld [vmem:[#allocation2 + $0x9] sm:$0xff]
        %v354 = vld [vmem:[#allocation2 + $0x19] sm:$0xff]
        %v355 = vld [vmem:[#allocation2 + $0x21] sm:$0xff]
        %v356 = vld [vmem:[#allocation2 + $0x31] sm:$0xff]
        %v357 = vld [vmem:[#allocation2 + $0x39] sm:$0xff]
        %v358 = vld [vmem:[#allocation2 + $0x49] sm:$0xff]
        %v359 = vld [vmem:[#allocation2 + $0x51] sm:$0xff]
        %v360 = vld [vmem:[#allocation2 + $0x61] sm:$0xff]
        %v361 = vld [vmem:[#allocation2 + $0x69] sm:$0xff]
        %v362 = vld [vmem:[#allocation2 + $0x79] sm:$0xff]
        %v363 = vld [vmem:[#allocation2 + $0x81] sm:$0xff]
        %v364 = vld [vmem:[#allocation2 + $0x91] sm:$0xff]
        %v365 = vld [vmem:[#allocation2 + $0x99] sm:$0xff]
        %v366 = vld [vmem:[#allocation2 + $0xa9] sm:$0xff]
        %v367 = vld [vmem:[#allocation2 + $0xb1] sm:$0xff]
        %v368 = vld [vmem:[#allocation2 + $0xc1] sm:$0xff]
        %v369 = vld [vmem:[#allocation2 + $0xc9] sm:$0xff]
        %v370 = vld [vmem:[#allocation2 + $0xd9] sm:$0xff]
        %v371 = vld [vmem:[#allocation2 + $0xe1] sm:$0xff]
        %v372 = vld [vmem:[#allocation2 + $0xf1] sm:$0xff]
        %v373 = vld [vmem:[#allocation2 + $0xf9] sm:$0xff]
        %v374 = vld [vmem:[#allocation2 + $0x109] sm:$0xff]
        %v375 = vld [vmem:[#allocation2 + $0x111] sm:$0xff]
        %v376 = vld [vmem:[#allocation2 + $0x121] sm:$0xff]
        %v377 = vld [vmem:[#allocation2 + $0x129] sm:$0xff]
        %v378 = vld [vmem:[#allocation2 + $0x139] sm:$0xff]
        %v379 = vld [vmem:[#allocation2 + $0x141] sm:$0xff]
        %v380 = vld [vmem:[#allocation2 + $0x151] sm:$0xff]
        %v381 = vld [vmem:[#allocation2 + $0x159] sm:$0xff]
        %v382 = vld [vmem:[#allocation2 + $0x169] sm:$0xff]
        %v383 = vld [vmem:[#allocation2 + $0x171] sm:$0xff]
        %416 = vrot.lane.b32.xlu0 %v352, 4
        %v417 = vpop.permute.xlu0 %416
        %418 = vrot.lane.b32.xlu0 %v353, 4
        %v419 = vpop.permute.xlu0 %418
        %420 = vrot.lane.b32.xlu0 %v354, 4
        %v421 = vpop.permute.xlu0 %420
        %422 = vrot.lane.b32.xlu0 %v355, 4
        %v423 = vpop.permute.xlu0 %422
        %424 = vrot.lane.b32.xlu0 %v356, 4
        %v425 = vpop.permute.xlu0 %424
        %426 = vrot.lane.b32.xlu0 %v357, 4
        %v427 = vpop.permute.xlu0 %426
        %428 = vrot.lane.b32.xlu0 %v358, 4
        %v429 = vpop.permute.xlu0 %428
        %430 = vrot.lane.b32.xlu0 %v359, 4
        %v431 = vpop.permute.xlu0 %430
        %432 = vrot.lane.b32.xlu0 %v360, 4
        %v433 = vpop.permute.xlu0 %432
        %434 = vrot.lane.b32.xlu0 %v361, 4
        %v435 = vpop.permute.xlu0 %434
        %436 = vrot.lane.b32.xlu0 %v362, 4
        %v437 = vpop.permute.xlu0 %436
        %438 = vrot.lane.b32.xlu0 %v363, 4
        %v439 = vpop.permute.xlu0 %438
        %440 = vrot.lane.b32.xlu0 %v364, 4
        %v441 = vpop.permute.xlu0 %440
        %442 = vrot.lane.b32.xlu0 %v365, 4
        %v443 = vpop.permute.xlu0 %442
        %444 = vrot.lane.b32.xlu0 %v366, 4
        %v445 = vpop.permute.xlu0 %444
        %446 = vrot.lane.b32.xlu0 %v367, 4
        %v447 = vpop.permute.xlu0 %446
        %448 = vrot.lane.b32.xlu0 %v368, 4
        %v449 = vpop.permute.xlu0 %448
        %450 = vrot.lane.b32.xlu0 %v369, 4
        %v451 = vpop.permute.xlu0 %450
        %452 = vrot.lane.b32.xlu0 %v370, 4
        %v453 = vpop.permute.xlu0 %452
        %454 = vrot.lane.b32.xlu0 %v371, 4
        %v455 = vpop.permute.xlu0 %454
        %456 = vrot.lane.b32.xlu0 %v372, 4
        %v457 = vpop.permute.xlu0 %456
        %458 = vrot.lane.b32.xlu0 %v373, 4
        %v459 = vpop.permute.xlu0 %458
        %460 = vrot.lane.b32.xlu0 %v374, 4
        %v461 = vpop.permute.xlu0 %460
        %462 = vrot.lane.b32.xlu0 %v375, 4
        %v463 = vpop.permute.xlu0 %462
        %464 = vrot.lane.b32.xlu0 %v376, 4
        %v465 = vpop.permute.xlu0 %464
        %466 = vrot.lane.b32.xlu0 %v377, 4
        %v467 = vpop.permute.xlu0 %466
        %468 = vrot.lane.b32.xlu0 %v378, 4
        %v469 = vpop.permute.xlu0 %468
        %470 = vrot.lane.b32.xlu0 %v379, 4
        %v471 = vpop.permute.xlu0 %470
        %472 = vrot.lane.b32.xlu0 %v380, 4
        %v473 = vpop.permute.xlu0 %472
        %474 = vrot.lane.b32.xlu0 %v381, 4
        %v475 = vpop.permute.xlu0 %474
        %476 = vrot.lane.b32.xlu0 %v382, 4
        %v477 = vpop.permute.xlu0 %476
        %478 = vrot.lane.b32.xlu0 %v383, 4
        %v479 = vpop.permute.xlu0 %478
        %vm512 = vcmask 64544
        %513 = vst.msk [vmem:[#allocation3] sm:$0xff] %vm512, %v417
        %514 = vst.msk [vmem:[#allocation3 + $0x8] sm:$0xff] %vm512, %v419
        %515 = vst.msk [vmem:[#allocation3 + $0x10] sm:$0xff] %vm512, %v421
        %516 = vst.msk [vmem:[#allocation3 + $0x18] sm:$0xff] %vm512, %v423
        %517 = vst.msk [vmem:[#allocation3 + $0x20] sm:$0xff] %vm512, %v425
        %518 = vst.msk [vmem:[#allocation3 + $0x28] sm:$0xff] %vm512, %v427
        %519 = vst.msk [vmem:[#allocation3 + $0x30] sm:$0xff] %vm512, %v429
        %520 = vst.msk [vmem:[#allocation3 + $0x38] sm:$0xff] %vm512, %v431
        %521 = vst.msk [vmem:[#allocation3 + $0x40] sm:$0xff] %vm512, %v433
        %522 = vst.msk [vmem:[#allocation3 + $0x48] sm:$0xff] %vm512, %v435
        %523 = vst.msk [vmem:[#allocation3 + $0x50] sm:$0xff] %vm512, %v437
        %524 = vst.msk [vmem:[#allocation3 + $0x58] sm:$0xff] %vm512, %v439
        %525 = vst.msk [vmem:[#allocation3 + $0x60] sm:$0xff] %vm512, %v441
        %526 = vst.msk [vmem:[#allocation3 + $0x68] sm:$0xff] %vm512, %v443
        %527 = vst.msk [vmem:[#allocation3 + $0x70] sm:$0xff] %vm512, %v445
        %528 = vst.msk [vmem:[#allocation3 + $0x78] sm:$0xff] %vm512, %v447
        %529 = vst.msk [vmem:[#allocation3 + $0x80] sm:$0xff] %vm512, %v449
        %530 = vst.msk [vmem:[#allocation3 + $0x88] sm:$0xff] %vm512, %v451
        %531 = vst.msk [vmem:[#allocation3 + $0x90] sm:$0xff] %vm512, %v453
        %532 = vst.msk [vmem:[#allocation3 + $0x98] sm:$0xff] %vm512, %v455
        %533 = vst.msk [vmem:[#allocation3 + $0xa0] sm:$0xff] %vm512, %v457
        %534 = vst.msk [vmem:[#allocation3 + $0xa8] sm:$0xff] %vm512, %v459
        %535 = vst.msk [vmem:[#allocation3 + $0xb0] sm:$0xff] %vm512, %v461
        %536 = vst.msk [vmem:[#allocation3 + $0xb8] sm:$0xff] %vm512, %v463
        %537 = vst.msk [vmem:[#allocation3 + $0xc0] sm:$0xff] %vm512, %v465
        %538 = vst.msk [vmem:[#allocation3 + $0xc8] sm:$0xff] %vm512, %v467
        %539 = vst.msk [vmem:[#allocation3 + $0xd0] sm:$0xff] %vm512, %v469
        %540 = vst.msk [vmem:[#allocation3 + $0xd8] sm:$0xff] %vm512, %v471
        %541 = vst.msk [vmem:[#allocation3 + $0xe0] sm:$0xff] %vm512, %v473
        %542 = vst.msk [vmem:[#allocation3 + $0xe8] sm:$0xff] %vm512, %v475
        %543 = vst.msk [vmem:[#allocation3 + $0xf0] sm:$0xff] %vm512, %v477
        %544 = vst.msk [vmem:[#allocation3 + $0xf8] sm:$0xff] %vm512, %v479
        %v545 = vld [vmem:[#allocation2 + $0x2] sm:$0xff]
        %v546 = vld [vmem:[#allocation2 + $0xa] sm:$0xff]
        %v547 = vld [vmem:[#allocation2 + $0x1a] sm:$0xff]
        %v548 = vld [vmem:[#allocation2 + $0x22] sm:$0xff]
        %v549 = vld [vmem:[#allocation2 + $0x32] sm:$0xff]
        %v550 = vld [vmem:[#allocation2 + $0x3a] sm:$0xff]
        %v551 = vld [vmem:[#allocation2 + $0x4a] sm:$0xff]
        %v552 = vld [vmem:[#allocation2 + $0x52] sm:$0xff]
        %v553 = vld [vmem:[#allocation2 + $0x62] sm:$0xff]
        %v554 = vld [vmem:[#allocation2 + $0x6a] sm:$0xff]
        %v555 = vld [vmem:[#allocation2 + $0x7a] sm:$0xff]
        %v556 = vld [vmem:[#allocation2 + $0x82] sm:$0xff]
        %v557 = vld [vmem:[#allocation2 + $0x92] sm:$0xff]
        %v558 = vld [vmem:[#allocation2 + $0x9a] sm:$0xff]
        %v559 = vld [vmem:[#allocation2 + $0xaa] sm:$0xff]
        %v560 = vld [vmem:[#allocation2 + $0xb2] sm:$0xff]
        %v561 = vld [vmem:[#allocation2 + $0xc2] sm:$0xff]
        %v562 = vld [vmem:[#allocation2 + $0xca] sm:$0xff]
        %v563 = vld [vmem:[#allocation2 + $0xda] sm:$0xff]
        %v564 = vld [vmem:[#allocation2 + $0xe2] sm:$0xff]
        %v565 = vld [vmem:[#allocation2 + $0xf2] sm:$0xff]
        %v566 = vld [vmem:[#allocation2 + $0xfa] sm:$0xff]
        %v567 = vld [vmem:[#allocation2 + $0x10a] sm:$0xff]
        %v568 = vld [vmem:[#allocation2 + $0x112] sm:$0xff]
        %v569 = vld [vmem:[#allocation2 + $0x122] sm:$0xff]
        %v570 = vld [vmem:[#allocation2 + $0x12a] sm:$0xff]
        %v571 = vld [vmem:[#allocation2 + $0x13a] sm:$0xff]
        %v572 = vld [vmem:[#allocation2 + $0x142] sm:$0xff]
        %v573 = vld [vmem:[#allocation2 + $0x152] sm:$0xff]
        %v574 = vld [vmem:[#allocation2 + $0x15a] sm:$0xff]
        %v575 = vld [vmem:[#allocation2 + $0x16a] sm:$0xff]
        %v576 = vld [vmem:[#allocation2 + $0x172] sm:$0xff]
        %609 = vrot.lane.b32.xlu0 %v545, 8
        %v610 = vpop.permute.xlu0 %609
        %611 = vrot.lane.b32.xlu0 %v546, 8
        %v612 = vpop.permute.xlu0 %611
        %613 = vrot.lane.b32.xlu0 %v547, 8
        %v614 = vpop.permute.xlu0 %613
        %615 = vrot.lane.b32.xlu0 %v548, 8
        %v616 = vpop.permute.xlu0 %615
        %617 = vrot.lane.b32.xlu0 %v549, 8
        %v618 = vpop.permute.xlu0 %617
        %619 = vrot.lane.b32.xlu0 %v550, 8
        %v620 = vpop.permute.xlu0 %619
        %621 = vrot.lane.b32.xlu0 %v551, 8
        %v622 = vpop.permute.xlu0 %621
        %623 = vrot.lane.b32.xlu0 %v552, 8
        %v624 = vpop.permute.xlu0 %623
        %625 = vrot.lane.b32.xlu0 %v553, 8
        %v626 = vpop.permute.xlu0 %625
        %627 = vrot.lane.b32.xlu0 %v554, 8
        %v628 = vpop.permute.xlu0 %627
        %629 = vrot.lane.b32.xlu0 %v555, 8
        %v630 = vpop.permute.xlu0 %629
        %631 = vrot.lane.b32.xlu0 %v556, 8
        %v632 = vpop.permute.xlu0 %631
        %633 = vrot.lane.b32.xlu0 %v557, 8
        %v634 = vpop.permute.xlu0 %633
        %635 = vrot.lane.b32.xlu0 %v558, 8
        %v636 = vpop.permute.xlu0 %635
        %637 = vrot.lane.b32.xlu0 %v559, 8
        %v638 = vpop.permute.xlu0 %637
        %639 = vrot.lane.b32.xlu0 %v560, 8
        %v640 = vpop.permute.xlu0 %639
        %641 = vrot.lane.b32.xlu0 %v561, 8
        %v642 = vpop.permute.xlu0 %641
        %643 = vrot.lane.b32.xlu0 %v562, 8
        %v644 = vpop.permute.xlu0 %643
        %645 = vrot.lane.b32.xlu0 %v563, 8
        %v646 = vpop.permute.xlu0 %645
        %647 = vrot.lane.b32.xlu0 %v564, 8
        %v648 = vpop.permute.xlu0 %647
        %649 = vrot.lane.b32.xlu0 %v565, 8
        %v650 = vpop.permute.xlu0 %649
        %651 = vrot.lane.b32.xlu0 %v566, 8
        %v652 = vpop.permute.xlu0 %651
        %653 = vrot.lane.b32.xlu0 %v567, 8
        %v654 = vpop.permute.xlu0 %653
        %655 = vrot.lane.b32.xlu0 %v568, 8
        %v656 = vpop.permute.xlu0 %655
        %657 = vrot.lane.b32.xlu0 %v569, 8
        %v658 = vpop.permute.xlu0 %657
        %659 = vrot.lane.b32.xlu0 %v570, 8
        %v660 = vpop.permute.xlu0 %659
        %661 = vrot.lane.b32.xlu0 %v571, 8
        %v662 = vpop.permute.xlu0 %661
        %663 = vrot.lane.b32.xlu0 %v572, 8
        %v664 = vpop.permute.xlu0 %663
        %665 = vrot.lane.b32.xlu0 %v573, 8
        %v666 = vpop.permute.xlu0 %665
        %667 = vrot.lane.b32.xlu0 %v574, 8
        %v668 = vpop.permute.xlu0 %667
        %669 = vrot.lane.b32.xlu0 %v575, 8
        %v670 = vpop.permute.xlu0 %669
        %671 = vrot.lane.b32.xlu0 %v576, 8
        %v672 = vpop.permute.xlu0 %671
        %vm705 = vcmask 97344
        %706 = vst.msk [vmem:[#allocation3] sm:$0xff] %vm705, %v610
        %707 = vst.msk [vmem:[#allocation3 + $0x8] sm:$0xff] %vm705, %v612
        %708 = vst.msk [vmem:[#allocation3 + $0x10] sm:$0xff] %vm705, %v614
        %709 = vst.msk [vmem:[#allocation3 + $0x18] sm:$0xff] %vm705, %v616
        %710 = vst.msk [vmem:[#allocation3 + $0x20] sm:$0xff] %vm705, %v618
        %711 = vst.msk [vmem:[#allocation3 + $0x28] sm:$0xff] %vm705, %v620
        %712 = vst.msk [vmem:[#allocation3 + $0x30] sm:$0xff] %vm705, %v622
        %713 = vst.msk [vmem:[#allocation3 + $0x38] sm:$0xff] %vm705, %v624
        %714 = vst.msk [vmem:[#allocation3 + $0x40] sm:$0xff] %vm705, %v626
        %715 = vst.msk [vmem:[#allocation3 + $0x48] sm:$0xff] %vm705, %v628
        %716 = vst.msk [vmem:[#allocation3 + $0x50] sm:$0xff] %vm705, %v630
        %717 = vst.msk [vmem:[#allocation3 + $0x58] sm:$0xff] %vm705, %v632
        %718 = vst.msk [vmem:[#allocation3 + $0x60] sm:$0xff] %vm705, %v634
        %719 = vst.msk [vmem:[#allocation3 + $0x68] sm:$0xff] %vm705, %v636
        %720 = vst.msk [vmem:[#allocation3 + $0x70] sm:$0xff] %vm705, %v638
        %721 = vst.msk [vmem:[#allocation3 + $0x78] sm:$0xff] %vm705, %v640
        %722 = vst.msk [vmem:[#allocation3 + $0x80] sm:$0xff] %vm705, %v642
        %723 = vst.msk [vmem:[#allocation3 + $0x88] sm:$0xff] %vm705, %v644
        %724 = vst.msk [vmem:[#allocation3 + $0x90] sm:$0xff] %vm705, %v646
        %725 = vst.msk [vmem:[#allocation3 + $0x98] sm:$0xff] %vm705, %v648
        %726 = vst.msk [vmem:[#allocation3 + $0xa0] sm:$0xff] %vm705, %v650
        %727 = vst.msk [vmem:[#allocation3 + $0xa8] sm:$0xff] %vm705, %v652
        %728 = vst.msk [vmem:[#allocation3 + $0xb0] sm:$0xff] %vm705, %v654
        %729 = vst.msk [vmem:[#allocation3 + $0xb8] sm:$0xff] %vm705, %v656
        %730 = vst.msk [vmem:[#allocation3 + $0xc0] sm:$0xff] %vm705, %v658
        %731 = vst.msk [vmem:[#allocation3 + $0xc8] sm:$0xff] %vm705, %v660
        %732 = vst.msk [vmem:[#allocation3 + $0xd0] sm:$0xff] %vm705, %v662
        %733 = vst.msk [vmem:[#allocation3 + $0xd8] sm:$0xff] %vm705, %v664
        %734 = vst.msk [vmem:[#allocation3 + $0xe0] sm:$0xff] %vm705, %v666
        %735 = vst.msk [vmem:[#allocation3 + $0xe8] sm:$0xff] %vm705, %v668
        %736 = vst.msk [vmem:[#allocation3 + $0xf0] sm:$0xff] %vm705, %v670
        %737 = vst.msk [vmem:[#allocation3 + $0xf8] sm:$0xff] %vm705, %v672
        %v738 = vld [vmem:[%s190] sm:$0xff]
        %v739 = vld [vmem:[%s190 + $0x8] sm:$0xff]
        %v740 = vld [vmem:[%s190 + $0x18] sm:$0xff]
        %v741 = vld [vmem:[%s190 + $0x20] sm:$0xff]
        %v742 = vld [vmem:[%s190 + $0x30] sm:$0xff]
        %v743 = vld [vmem:[%s190 + $0x38] sm:$0xff]
        %v744 = vld [vmem:[%s190 + $0x48] sm:$0xff]
        %v745 = vld [vmem:[%s190 + $0x50] sm:$0xff]
        %v746 = vld [vmem:[%s190 + $0x60] sm:$0xff]
        %v747 = vld [vmem:[%s190 + $0x68] sm:$0xff]
        %v748 = vld [vmem:[%s190 + $0x78] sm:$0xff]
        %v749 = vld [vmem:[%s190 + $0x80] sm:$0xff]
        %v750 = vld [vmem:[%s190 + $0x90] sm:$0xff]
        %v751 = vld [vmem:[%s190 + $0x98] sm:$0xff]
        %v752 = vld [vmem:[%s190 + $0xa8] sm:$0xff]
        %v753 = vld [vmem:[%s190 + $0xb0] sm:$0xff]
        %v754 = vld [vmem:[%s190 + $0xc0] sm:$0xff]
        %v755 = vld [vmem:[%s190 + $0xc8] sm:$0xff]
        %v756 = vld [vmem:[%s190 + $0xd8] sm:$0xff]
        %v757 = vld [vmem:[%s190 + $0xe0] sm:$0xff]
        %v758 = vld [vmem:[%s190 + $0xf0] sm:$0xff]
        %v759 = vld [vmem:[%s190 + $0xf8] sm:$0xff]
        %v760 = vld [vmem:[%s190 + $0x108] sm:$0xff]
        %v761 = vld [vmem:[%s190 + $0x110] sm:$0xff]
        %v762 = vld [vmem:[%s190 + $0x120] sm:$0xff]
        %v763 = vld [vmem:[%s190 + $0x128] sm:$0xff]
        %v764 = vld [vmem:[%s190 + $0x138] sm:$0xff]
        %v765 = vld [vmem:[%s190 + $0x140] sm:$0xff]
        %v766 = vld [vmem:[%s190 + $0x150] sm:$0xff]
        %v767 = vld [vmem:[%s190 + $0x158] sm:$0xff]
        %v768 = vld [vmem:[%s190 + $0x168] sm:$0xff]
        %v769 = vld [vmem:[%s190 + $0x170] sm:$0xff]
        %802 = vrot.lane.b32.xlu0 %v738, 12
        %v803 = vpop.permute.xlu0 %802
        %804 = vrot.lane.b32.xlu0 %v739, 12
        %v805 = vpop.permute.xlu0 %804
        %806 = vrot.lane.b32.xlu0 %v740, 12
        %v807 = vpop.permute.xlu0 %806
        %808 = vrot.lane.b32.xlu0 %v741, 12
        %v809 = vpop.permute.xlu0 %808
        %810 = vrot.lane.b32.xlu0 %v742, 12
        %v811 = vpop.permute.xlu0 %810
        %812 = vrot.lane.b32.xlu0 %v743, 12
        %v813 = vpop.permute.xlu0 %812
        %814 = vrot.lane.b32.xlu0 %v744, 12
        %v815 = vpop.permute.xlu0 %814
        %816 = vrot.lane.b32.xlu0 %v745, 12
        %v817 = vpop.permute.xlu0 %816
        %818 = vrot.lane.b32.xlu0 %v746, 12
        %v819 = vpop.permute.xlu0 %818
        %820 = vrot.lane.b32.xlu0 %v747, 12
        %v821 = vpop.permute.xlu0 %820
        %822 = vrot.lane.b32.xlu0 %v748, 12
        %v823 = vpop.permute.xlu0 %822
        %824 = vrot.lane.b32.xlu0 %v749, 12
        %v825 = vpop.permute.xlu0 %824
        %826 = vrot.lane.b32.xlu0 %v750, 12
        %v827 = vpop.permute.xlu0 %826
        %828 = vrot.lane.b32.xlu0 %v751, 12
        %v829 = vpop.permute.xlu0 %828
        %830 = vrot.lane.b32.xlu0 %v752, 12
        %v831 = vpop.permute.xlu0 %830
        %832 = vrot.lane.b32.xlu0 %v753, 12
        %v833 = vpop.permute.xlu0 %832
        %834 = vrot.lane.b32.xlu0 %v754, 12
        %v835 = vpop.permute.xlu0 %834
        %836 = vrot.lane.b32.xlu0 %v755, 12
        %v837 = vpop.permute.xlu0 %836
        %838 = vrot.lane.b32.xlu0 %v756, 12
        %v839 = vpop.permute.xlu0 %838
        %840 = vrot.lane.b32.xlu0 %v757, 12
        %v841 = vpop.permute.xlu0 %840
        %842 = vrot.lane.b32.xlu0 %v758, 12
        %v843 = vpop.permute.xlu0 %842
        %844 = vrot.lane.b32.xlu0 %v759, 12
        %v845 = vpop.permute.xlu0 %844
        %846 = vrot.lane.b32.xlu0 %v760, 12
        %v847 = vpop.permute.xlu0 %846
        %848 = vrot.lane.b32.xlu0 %v761, 12
        %v849 = vpop.permute.xlu0 %848
        %850 = vrot.lane.b32.xlu0 %v762, 12
        %v851 = vpop.permute.xlu0 %850
        %852 = vrot.lane.b32.xlu0 %v763, 12
        %v853 = vpop.permute.xlu0 %852
        %854 = vrot.lane.b32.xlu0 %v764, 12
        %v855 = vpop.permute.xlu0 %854
        %856 = vrot.lane.b32.xlu0 %v765, 12
        %v857 = vpop.permute.xlu0 %856
        %858 = vrot.lane.b32.xlu0 %v766, 12
        %v859 = vpop.permute.xlu0 %858
        %860 = vrot.lane.b32.xlu0 %v767, 12
        %v861 = vpop.permute.xlu0 %860
        %862 = vrot.lane.b32.xlu0 %v768, 12
        %v863 = vpop.permute.xlu0 %862
        %864 = vrot.lane.b32.xlu0 %v769, 12
        %v865 = vpop.permute.xlu0 %864
        %vm898 = vcmask 130144
        %899 = vst.msk [vmem:[#allocation3] sm:$0xff] %vm898, %v803
        %900 = vst.msk [vmem:[#allocation3 + $0x8] sm:$0xff] %vm898, %v805
        %901 = vst.msk [vmem:[#allocation3 + $0x10] sm:$0xff] %vm898, %v807
        %902 = vst.msk [vmem:[#allocation3 + $0x18] sm:$0xff] %vm898, %v809
        %903 = vst.msk [vmem:[#allocation3 + $0x20] sm:$0xff] %vm898, %v811
        %904 = vst.msk [vmem:[#allocation3 + $0x28] sm:$0xff] %vm898, %v813
        %905 = vst.msk [vmem:[#allocation3 + $0x30] sm:$0xff] %vm898, %v815
        %906 = vst.msk [vmem:[#allocation3 + $0x38] sm:$0xff] %vm898, %v817
        %907 = vst.msk [vmem:[#allocation3 + $0x40] sm:$0xff] %vm898, %v819
        %908 = vst.msk [vmem:[#allocation3 + $0x48] sm:$0xff] %vm898, %v821
        %909 = vst.msk [vmem:[#allocation3 + $0x50] sm:$0xff] %vm898, %v823
        %910 = vst.msk [vmem:[#allocation3 + $0x58] sm:$0xff] %vm898, %v825
        %911 = vst.msk [vmem:[#allocation3 + $0x60] sm:$0xff] %vm898, %v827
        %912 = vst.msk [vmem:[#allocation3 + $0x68] sm:$0xff] %vm898, %v829
        %913 = vst.msk [vmem:[#allocation3 + $0x70] sm:$0xff] %vm898, %v831
        %914 = vst.msk [vmem:[#allocation3 + $0x78] sm:$0xff] %vm898, %v833
        %915 = vst.msk [vmem:[#allocation3 + $0x80] sm:$0xff] %vm898, %v835
        %916 = vst.msk [vmem:[#allocation3 + $0x88] sm:$0xff] %vm898, %v837
        %917 = vst.msk [vmem:[#allocation3 + $0x90] sm:$0xff] %vm898, %v839
        %918 = vst.msk [vmem:[#allocation3 + $0x98] sm:$0xff] %vm898, %v841
        %919 = vst.msk [vmem:[#allocation3 + $0xa0] sm:$0xff] %vm898, %v843
        %920 = vst.msk [vmem:[#allocation3 + $0xa8] sm:$0xff] %vm898, %v845
        %921 = vst.msk [vmem:[#allocation3 + $0xb0] sm:$0xff] %vm898, %v847
        %922 = vst.msk [vmem:[#allocation3 + $0xb8] sm:$0xff] %vm898, %v849
        %923 = vst.msk [vmem:[#allocation3 + $0xc0] sm:$0xff] %vm898, %v851
        %924 = vst.msk [vmem:[#allocation3 + $0xc8] sm:$0xff] %vm898, %v853
        %925 = vst.msk [vmem:[#allocation3 + $0xd0] sm:$0xff] %vm898, %v855
        %926 = vst.msk [vmem:[#allocation3 + $0xd8] sm:$0xff] %vm898, %v857
        %927 = vst.msk [vmem:[#allocation3 + $0xe0] sm:$0xff] %vm898, %v859
        %928 = vst.msk [vmem:[#allocation3 + $0xe8] sm:$0xff] %vm898, %v861
        %929 = vst.msk [vmem:[#allocation3 + $0xf0] sm:$0xff] %vm898, %v863
        %930 = vst.msk [vmem:[#allocation3 + $0xf8] sm:$0xff] %vm898, %v865
        %v931 = vld [vmem:[%s190 + $0x1] sm:$0xff]
        %v932 = vld [vmem:[%s190 + $0x9] sm:$0xff]
        %v933 = vld [vmem:[%s190 + $0x19] sm:$0xff]
        %v934 = vld [vmem:[%s190 + $0x21] sm:$0xff]
        %v935 = vld [vmem:[%s190 + $0x31] sm:$0xff]
        %v936 = vld [vmem:[%s190 + $0x39] sm:$0xff]
        %v937 = vld [vmem:[%s190 + $0x49] sm:$0xff]
        %v938 = vld [vmem:[%s190 + $0x51] sm:$0xff]
        %v939 = vld [vmem:[%s190 + $0x61] sm:$0xff]
        %v940 = vld [vmem:[%s190 + $0x69] sm:$0xff]
        %v941 = vld [vmem:[%s190 + $0x79] sm:$0xff]
        %v942 = vld [vmem:[%s190 + $0x81] sm:$0xff]
        %v943 = vld [vmem:[%s190 + $0x91] sm:$0xff]
        %v944 = vld [vmem:[%s190 + $0x99] sm:$0xff]
        %v945 = vld [vmem:[%s190 + $0xa9] sm:$0xff]
        %v946 = vld [vmem:[%s190 + $0xb1] sm:$0xff]
        %v947 = vld [vmem:[%s190 + $0xc1] sm:$0xff]
        %v948 = vld [vmem:[%s190 + $0xc9] sm:$0xff]
        %v949 = vld [vmem:[%s190 + $0xd9] sm:$0xff]
        %v950 = vld [vmem:[%s190 + $0xe1] sm:$0xff]
        %v951 = vld [vmem:[%s190 + $0xf1] sm:$0xff]
        %v952 = vld [vmem:[%s190 + $0xf9] sm:$0xff]
        %v953 = vld [vmem:[%s190 + $0x109] sm:$0xff]
        %v954 = vld [vmem:[%s190 + $0x111] sm:$0xff]
        %v955 = vld [vmem:[%s190 + $0x121] sm:$0xff]
        %v956 = vld [vmem:[%s190 + $0x129] sm:$0xff]
        %v957 = vld [vmem:[%s190 + $0x139] sm:$0xff]
        %v958 = vld [vmem:[%s190 + $0x141] sm:$0xff]
        %v959 = vld [vmem:[%s190 + $0x151] sm:$0xff]
        %v960 = vld [vmem:[%s190 + $0x159] sm:$0xff]
        %v961 = vld [vmem:[%s190 + $0x169] sm:$0xff]
        %v962 = vld [vmem:[%s190 + $0x171] sm:$0xff]
        %995 = vrot.lane.b32.xlu0 %v931, 16
        %v996 = vpop.permute.xlu0 %995
        %997 = vrot.lane.b32.xlu0 %v932, 16
        %v998 = vpop.permute.xlu0 %997
        %999 = vrot.lane.b32.xlu0 %v933, 16
        %v1000 = vpop.permute.xlu0 %999
        %1001 = vrot.lane.b32.xlu0 %v934, 16
        %v1002 = vpop.permute.xlu0 %1001
        %1003 = vrot.lane.b32.xlu0 %v935, 16
        %v1004 = vpop.permute.xlu0 %1003
        %1005 = vrot.lane.b32.xlu0 %v936, 16
        %v1006 = vpop.permute.xlu0 %1005
        %1007 = vrot.lane.b32.xlu0 %v937, 16
        %v1008 = vpop.permute.xlu0 %1007
        %1009 = vrot.lane.b32.xlu0 %v938, 16
        %v1010 = vpop.permute.xlu0 %1009
        %1011 = vrot.lane.b32.xlu0 %v939, 16
        %v1012 = vpop.permute.xlu0 %1011
        %1013 = vrot.lane.b32.xlu0 %v940, 16
        %v1014 = vpop.permute.xlu0 %1013
        %1015 = vrot.lane.b32.xlu0 %v941, 16
        %v1016 = vpop.permute.xlu0 %1015
        %1017 = vrot.lane.b32.xlu0 %v942, 16
        %v1018 = vpop.permute.xlu0 %1017
        %1019 = vrot.lane.b32.xlu0 %v943, 16
        %v1020 = vpop.permute.xlu0 %1019
        %1021 = vrot.lane.b32.xlu0 %v944, 16
        %v1022 = vpop.permute.xlu0 %1021
        %1023 = vrot.lane.b32.xlu0 %v945, 16
        %v1024 = vpop.permute.xlu0 %1023
        %1025 = vrot.lane.b32.xlu0 %v946, 16
        %v1026 = vpop.permute.xlu0 %1025
        %1027 = vrot.lane.b32.xlu0 %v947, 16
        %v1028 = vpop.permute.xlu0 %1027
        %1029 = vrot.lane.b32.xlu0 %v948, 16
        %v1030 = vpop.permute.xlu0 %1029
        %1031 = vrot.lane.b32.xlu0 %v949, 16
        %v1032 = vpop.permute.xlu0 %1031
        %1033 = vrot.lane.b32.xlu0 %v950, 16
        %v1034 = vpop.permute.xlu0 %1033
        %1035 = vrot.lane.b32.xlu0 %v951, 16
        %v1036 = vpop.permute.xlu0 %1035
        %1037 = vrot.lane.b32.xlu0 %v952, 16
        %v1038 = vpop.permute.xlu0 %1037
        %1039 = vrot.lane.b32.xlu0 %v953, 16
        %v1040 = vpop.permute.xlu0 %1039
        %1041 = vrot.lane.b32.xlu0 %v954, 16
        %v1042 = vpop.permute.xlu0 %1041
        %1043 = vrot.lane.b32.xlu0 %v955, 16
        %v1044 = vpop.permute.xlu0 %1043
        %1045 = vrot.lane.b32.xlu0 %v956, 16
        %v1046 = vpop.permute.xlu0 %1045
        %1047 = vrot.lane.b32.xlu0 %v957, 16
        %v1048 = vpop.permute.xlu0 %1047
        %1049 = vrot.lane.b32.xlu0 %v958, 16
        %v1050 = vpop.permute.xlu0 %1049
        %1051 = vrot.lane.b32.xlu0 %v959, 16
        %v1052 = vpop.permute.xlu0 %1051
        %1053 = vrot.lane.b32.xlu0 %v960, 16
        %v1054 = vpop.permute.xlu0 %1053
        %1055 = vrot.lane.b32.xlu0 %v961, 16
        %v1056 = vpop.permute.xlu0 %1055
        %1057 = vrot.lane.b32.xlu0 %v962, 16
        %v1058 = vpop.permute.xlu0 %1057
        %vm1091 = vcmask 162944
        %1092 = vst.msk [vmem:[#allocation3] sm:$0xff] %vm1091, %v996
        %1093 = vst.msk [vmem:[#allocation3 + $0x8] sm:$0xff] %vm1091, %v998
        %1094 = vst.msk [vmem:[#allocation3 + $0x10] sm:$0xff] %vm1091, %v1000
        %1095 = vst.msk [vmem:[#allocation3 + $0x18] sm:$0xff] %vm1091, %v1002
        %1096 = vst.msk [vmem:[#allocation3 + $0x20] sm:$0xff] %vm1091, %v1004
        %1097 = vst.msk [vmem:[#allocation3 + $0x28] sm:$0xff] %vm1091, %v1006
        %1098 = vst.msk [vmem:[#allocation3 + $0x30] sm:$0xff] %vm1091, %v1008
        %1099 = vst.msk [vmem:[#allocation3 + $0x38] sm:$0xff] %vm1091, %v1010
        %1100 = vst.msk [vmem:[#allocation3 + $0x40] sm:$0xff] %vm1091, %v1012
        %1101 = vst.msk [vmem:[#allocation3 + $0x48] sm:$0xff] %vm1091, %v1014
        %1102 = vst.msk [vmem:[#allocation3 + $0x50] sm:$0xff] %vm1091, %v1016
        %1103 = vst.msk [vmem:[#allocation3 + $0x58] sm:$0xff] %vm1091, %v1018
        %1104 = vst.msk [vmem:[#allocation3 + $0x60] sm:$0xff] %vm1091, %v1020
        %1105 = vst.msk [vmem:[#allocation3 + $0x68] sm:$0xff] %vm1091, %v1022
        %1106 = vst.msk [vmem:[#allocation3 + $0x70] sm:$0xff] %vm1091, %v1024
        %1107 = vst.msk [vmem:[#allocation3 + $0x78] sm:$0xff] %vm1091, %v1026
        %1108 = vst.msk [vmem:[#allocation3 + $0x80] sm:$0xff] %vm1091, %v1028
        %1109 = vst.msk [vmem:[#allocation3 + $0x88] sm:$0xff] %vm1091, %v1030
        %1110 = vst.msk [vmem:[#allocation3 + $0x90] sm:$0xff] %vm1091, %v1032
        %1111 = vst.msk [vmem:[#allocation3 + $0x98] sm:$0xff] %vm1091, %v1034
        %1112 = vst.msk [vmem:[#allocation3 + $0xa0] sm:$0xff] %vm1091, %v1036
        %1113 = vst.msk [vmem:[#allocation3 + $0xa8] sm:$0xff] %vm1091, %v1038
        %1114 = vst.msk [vmem:[#allocation3 + $0xb0] sm:$0xff] %vm1091, %v1040
        %1115 = vst.msk [vmem:[#allocation3 + $0xb8] sm:$0xff] %vm1091, %v1042
        %1116 = vst.msk [vmem:[#allocation3 + $0xc0] sm:$0xff] %vm1091, %v1044
        %1117 = vst.msk [vmem:[#allocation3 + $0xc8] sm:$0xff] %vm1091, %v1046
        %1118 = vst.msk [vmem:[#allocation3 + $0xd0] sm:$0xff] %vm1091, %v1048
        %1119 = vst.msk [vmem:[#allocation3 + $0xd8] sm:$0xff] %vm1091, %v1050
        %1120 = vst.msk [vmem:[#allocation3 + $0xe0] sm:$0xff] %vm1091, %v1052
        %1121 = vst.msk [vmem:[#allocation3 + $0xe8] sm:$0xff] %vm1091, %v1054
        %1122 = vst.msk [vmem:[#allocation3 + $0xf0] sm:$0xff] %vm1091, %v1056
        %1123 = vst.msk [vmem:[#allocation3 + $0xf8] sm:$0xff] %vm1091, %v1058
        %v1124 = vld [vmem:[%s190 + $0x2] sm:$0xff]
        %v1125 = vld [vmem:[%s190 + $0xa] sm:$0xff]
        %v1126 = vld [vmem:[%s190 + $0x1a] sm:$0xff]
        %v1127 = vld [vmem:[%s190 + $0x22] sm:$0xff]
        %v1128 = vld [vmem:[%s190 + $0x32] sm:$0xff]
        %v1129 = vld [vmem:[%s190 + $0x3a] sm:$0xff]
        %v1130 = vld [vmem:[%s190 + $0x4a] sm:$0xff]
        %v1131 = vld [vmem:[%s190 + $0x52] sm:$0xff]
        %v1132 = vld [vmem:[%s190 + $0x62] sm:$0xff]
        %v1133 = vld [vmem:[%s190 + $0x6a] sm:$0xff]
        %v1134 = vld [vmem:[%s190 + $0x7a] sm:$0xff]
        %v1135 = vld [vmem:[%s190 + $0x82] sm:$0xff]
        %v1136 = vld [vmem:[%s190 + $0x92] sm:$0xff]
        %v1137 = vld [vmem:[%s190 + $0x9a] sm:$0xff]
        %v1138 = vld [vmem:[%s190 + $0xaa] sm:$0xff]
        %v1139 = vld [vmem:[%s190 + $0xb2] sm:$0xff]
        %v1140 = vld [vmem:[%s190 + $0xc2] sm:$0xff]
        %v1141 = vld [vmem:[%s190 + $0xca] sm:$0xff]
        %v1142 = vld [vmem:[%s190 + $0xda] sm:$0xff]
        %v1143 = vld [vmem:[%s190 + $0xe2] sm:$0xff]
        %v1144 = vld [vmem:[%s190 + $0xf2] sm:$0xff]
        %v1145 = vld [vmem:[%s190 + $0xfa] sm:$0xff]
        %v1146 = vld [vmem:[%s190 + $0x10a] sm:$0xff]
        %v1147 = vld [vmem:[%s190 + $0x112] sm:$0xff]
        %v1148 = vld [vmem:[%s190 + $0x122] sm:$0xff]
        %v1149 = vld [vmem:[%s190 + $0x12a] sm:$0xff]
        %v1150 = vld [vmem:[%s190 + $0x13a] sm:$0xff]
        %v1151 = vld [vmem:[%s190 + $0x142] sm:$0xff]
        %v1152 = vld [vmem:[%s190 + $0x152] sm:$0xff]
        %v1153 = vld [vmem:[%s190 + $0x15a] sm:$0xff]
        %v1154 = vld [vmem:[%s190 + $0x16a] sm:$0xff]
        %v1155 = vld [vmem:[%s190 + $0x172] sm:$0xff]
        %1188 = vrot.lane.b32.xlu0 %v1124, 20
        %v1189 = vpop.permute.xlu0 %1188
        %1190 = vrot.lane.b32.xlu0 %v1125, 20
        %v1191 = vpop.permute.xlu0 %1190
        %1192 = vrot.lane.b32.xlu0 %v1126, 20
        %v1193 = vpop.permute.xlu0 %1192
        %1194 = vrot.lane.b32.xlu0 %v1127, 20
        %v1195 = vpop.permute.xlu0 %1194
        %1196 = vrot.lane.b32.xlu0 %v1128, 20
        %v1197 = vpop.permute.xlu0 %1196
        %1198 = vrot.lane.b32.xlu0 %v1129, 20
        %v1199 = vpop.permute.xlu0 %1198
        %1200 = vrot.lane.b32.xlu0 %v1130, 20
        %v1201 = vpop.permute.xlu0 %1200
        %1202 = vrot.lane.b32.xlu0 %v1131, 20
        %v1203 = vpop.permute.xlu0 %1202
        %1204 = vrot.lane.b32.xlu0 %v1132, 20
        %v1205 = vpop.permute.xlu0 %1204
        %1206 = vrot.lane.b32.xlu0 %v1133, 20
        %v1207 = vpop.permute.xlu0 %1206
        %1208 = vrot.lane.b32.xlu0 %v1134, 20
        %v1209 = vpop.permute.xlu0 %1208
        %1210 = vrot.lane.b32.xlu0 %v1135, 20
        %v1211 = vpop.permute.xlu0 %1210
        %1212 = vrot.lane.b32.xlu0 %v1136, 20
        %v1213 = vpop.permute.xlu0 %1212
        %1214 = vrot.lane.b32.xlu0 %v1137, 20
        %v1215 = vpop.permute.xlu0 %1214
        %1216 = vrot.lane.b32.xlu0 %v1138, 20
        %v1217 = vpop.permute.xlu0 %1216
        %1218 = vrot.lane.b32.xlu0 %v1139, 20
        %v1219 = vpop.permute.xlu0 %1218
        %1220 = vrot.lane.b32.xlu0 %v1140, 20
        %v1221 = vpop.permute.xlu0 %1220
        %1222 = vrot.lane.b32.xlu0 %v1141, 20
        %v1223 = vpop.permute.xlu0 %1222
        %1224 = vrot.lane.b32.xlu0 %v1142, 20
        %v1225 = vpop.permute.xlu0 %1224
        %1226 = vrot.lane.b32.xlu0 %v1143, 20
        %v1227 = vpop.permute.xlu0 %1226
        %1228 = vrot.lane.b32.xlu0 %v1144, 20
        %v1229 = vpop.permute.xlu0 %1228
        %1230 = vrot.lane.b32.xlu0 %v1145, 20
        %v1231 = vpop.permute.xlu0 %1230
        %1232 = vrot.lane.b32.xlu0 %v1146, 20
        %v1233 = vpop.permute.xlu0 %1232
        %1234 = vrot.lane.b32.xlu0 %v1147, 20
        %v1235 = vpop.permute.xlu0 %1234
        %1236 = vrot.lane.b32.xlu0 %v1148, 20
        %v1237 = vpop.permute.xlu0 %1236
        %1238 = vrot.lane.b32.xlu0 %v1149, 20
        %v1239 = vpop.permute.xlu0 %1238
        %1240 = vrot.lane.b32.xlu0 %v1150, 20
        %v1241 = vpop.permute.xlu0 %1240
        %1242 = vrot.lane.b32.xlu0 %v1151, 20
        %v1243 = vpop.permute.xlu0 %1242
        %1244 = vrot.lane.b32.xlu0 %v1152, 20
        %v1245 = vpop.permute.xlu0 %1244
        %1246 = vrot.lane.b32.xlu0 %v1153, 20
        %v1247 = vpop.permute.xlu0 %1246
        %1248 = vrot.lane.b32.xlu0 %v1154, 20
        %v1249 = vpop.permute.xlu0 %1248
        %1250 = vrot.lane.b32.xlu0 %v1155, 20
        %v1251 = vpop.permute.xlu0 %1250
        %vm1284 = vcmask 195744
        %1285 = vst.msk [vmem:[#allocation3] sm:$0xff] %vm1284, %v1189
        %1286 = vst.msk [vmem:[#allocation3 + $0x8] sm:$0xff] %vm1284, %v1191
        %1287 = vst.msk [vmem:[#allocation3 + $0x10] sm:$0xff] %vm1284, %v1193
        %1288 = vst.msk [vmem:[#allocation3 + $0x18] sm:$0xff] %vm1284, %v1195
        %1289 = vst.msk [vmem:[#allocation3 + $0x20] sm:$0xff] %vm1284, %v1197
        %1290 = vst.msk [vmem:[#allocation3 + $0x28] sm:$0xff] %vm1284, %v1199
        %1291 = vst.msk [vmem:[#allocation3 + $0x30] sm:$0xff] %vm1284, %v1201
        %1292 = vst.msk [vmem:[#allocation3 + $0x38] sm:$0xff] %vm1284, %v1203
        %1293 = vst.msk [vmem:[#allocation3 + $0x40] sm:$0xff] %vm1284, %v1205
        %1294 = vst.msk [vmem:[#allocation3 + $0x48] sm:$0xff] %vm1284, %v1207
        %1295 = vst.msk [vmem:[#allocation3 + $0x50] sm:$0xff] %vm1284, %v1209
        %1296 = vst.msk [vmem:[#allocation3 + $0x58] sm:$0xff] %vm1284, %v1211
        %1297 = vst.msk [vmem:[#allocation3 + $0x60] sm:$0xff] %vm1284, %v1213
        %1298 = vst.msk [vmem:[#allocation3 + $0x68] sm:$0xff] %vm1284, %v1215
        %1299 = vst.msk [vmem:[#allocation3 + $0x70] sm:$0xff] %vm1284, %v1217
        %1300 = vst.msk [vmem:[#allocation3 + $0x78] sm:$0xff] %vm1284, %v1219
        %1301 = vst.msk [vmem:[#allocation3 + $0x80] sm:$0xff] %vm1284, %v1221
        %1302 = vst.msk [vmem:[#allocation3 + $0x88] sm:$0xff] %vm1284, %v1223
        %1303 = vst.msk [vmem:[#allocation3 + $0x90] sm:$0xff] %vm1284, %v1225
        %1304 = vst.msk [vmem:[#allocation3 + $0x98] sm:$0xff] %vm1284, %v1227
        %1305 = vst.msk [vmem:[#allocation3 + $0xa0] sm:$0xff] %vm1284, %v1229
        %1306 = vst.msk [vmem:[#allocation3 + $0xa8] sm:$0xff] %vm1284, %v1231
        %1307 = vst.msk [vmem:[#allocation3 + $0xb0] sm:$0xff] %vm1284, %v1233
        %1308 = vst.msk [vmem:[#allocation3 + $0xb8] sm:$0xff] %vm1284, %v1235
        %1309 = vst.msk [vmem:[#allocation3 + $0xc0] sm:$0xff] %vm1284, %v1237
        %1310 = vst.msk [vmem:[#allocation3 + $0xc8] sm:$0xff] %vm1284, %v1239
        %1311 = vst.msk [vmem:[#allocation3 + $0xd0] sm:$0xff] %vm1284, %v1241
        %1312 = vst.msk [vmem:[#allocation3 + $0xd8] sm:$0xff] %vm1284, %v1243
        %1313 = vst.msk [vmem:[#allocation3 + $0xe0] sm:$0xff] %vm1284, %v1245
        %1314 = vst.msk [vmem:[#allocation3 + $0xe8] sm:$0xff] %vm1284, %v1247
        %1315 = vst.msk [vmem:[#allocation3 + $0xf0] sm:$0xff] %vm1284, %v1249
        %1316 = vst.msk [vmem:[#allocation3 + $0xf8] sm:$0xff] %vm1284, %v1251
        %s1317 = scalar_lea.vmem [#allocation2], 48
        %v1318 = vld [vmem:[%s1317] sm:$0xff]
        %v1319 = vld [vmem:[%s1317 + $0x8] sm:$0xff]
        %v1320 = vld [vmem:[%s1317 + $0x18] sm:$0xff]
        %v1321 = vld [vmem:[%s1317 + $0x20] sm:$0xff]
        %v1322 = vld [vmem:[%s1317 + $0x30] sm:$0xff]
        %v1323 = vld [vmem:[%s1317 + $0x38] sm:$0xff]
        %v1324 = vld [vmem:[%s1317 + $0x48] sm:$0xff]
        %v1325 = vld [vmem:[%s1317 + $0x50] sm:$0xff]
        %v1326 = vld [vmem:[%s1317 + $0x60] sm:$0xff]
        %v1327 = vld [vmem:[%s1317 + $0x68] sm:$0xff]
        %v1328 = vld [vmem:[%s1317 + $0x78] sm:$0xff]
        %v1329 = vld [vmem:[%s1317 + $0x80] sm:$0xff]
        %v1330 = vld [vmem:[%s1317 + $0x90] sm:$0xff]
        %v1331 = vld [vmem:[%s1317 + $0x98] sm:$0xff]
        %v1332 = vld [vmem:[%s1317 + $0xa8] sm:$0xff]
        %v1333 = vld [vmem:[%s1317 + $0xb0] sm:$0xff]
        %v1334 = vld [vmem:[%s1317 + $0xc0] sm:$0xff]
        %v1335 = vld [vmem:[%s1317 + $0xc8] sm:$0xff]
        %v1336 = vld [vmem:[%s1317 + $0xd8] sm:$0xff]
        %v1337 = vld [vmem:[%s1317 + $0xe0] sm:$0xff]
        %v1338 = vld [vmem:[%s1317 + $0xf0] sm:$0xff]
        %v1339 = vld [vmem:[%s1317 + $0xf8] sm:$0xff]
        %v1340 = vld [vmem:[%s1317 + $0x108] sm:$0xff]
        %v1341 = vld [vmem:[%s1317 + $0x110] sm:$0xff]
        %v1342 = vld [vmem:[%s1317 + $0x120] sm:$0xff]
        %v1343 = vld [vmem:[%s1317 + $0x128] sm:$0xff]
        %v1344 = vld [vmem:[%s1317 + $0x138] sm:$0xff]
        %v1345 = vld [vmem:[%s1317 + $0x140] sm:$0xff]
        %v1346 = vld [vmem:[%s1317 + $0x150] sm:$0xff]
        %v1347 = vld [vmem:[%s1317 + $0x158] sm:$0xff]
        %v1348 = vld [vmem:[%s1317 + $0x168] sm:$0xff]
        %v1349 = vld [vmem:[%s1317 + $0x170] sm:$0xff]
        %1382 = vrot.lane.b32.xlu0 %v1318, 24
        %v1383 = vpop.permute.xlu0 %1382
        %1384 = vrot.lane.b32.xlu0 %v1319, 24
        %v1385 = vpop.permute.xlu0 %1384
        %1386 = vrot.lane.b32.xlu0 %v1320, 24
        %v1387 = vpop.permute.xlu0 %1386
        %1388 = vrot.lane.b32.xlu0 %v1321, 24
        %v1389 = vpop.permute.xlu0 %1388
        %1390 = vrot.lane.b32.xlu0 %v1322, 24
        %v1391 = vpop.permute.xlu0 %1390
        %1392 = vrot.lane.b32.xlu0 %v1323, 24
        %v1393 = vpop.permute.xlu0 %1392
        %1394 = vrot.lane.b32.xlu0 %v1324, 24
        %v1395 = vpop.permute.xlu0 %1394
        %1396 = vrot.lane.b32.xlu0 %v1325, 24
        %v1397 = vpop.permute.xlu0 %1396
        %1398 = vrot.lane.b32.xlu0 %v1326, 24
        %v1399 = vpop.permute.xlu0 %1398
        %1400 = vrot.lane.b32.xlu0 %v1327, 24
        %v1401 = vpop.permute.xlu0 %1400
        %1402 = vrot.lane.b32.xlu0 %v1328, 24
        %v1403 = vpop.permute.xlu0 %1402
        %1404 = vrot.lane.b32.xlu0 %v1329, 24
        %v1405 = vpop.permute.xlu0 %1404
        %1406 = vrot.lane.b32.xlu0 %v1330, 24
        %v1407 = vpop.permute.xlu0 %1406
        %1408 = vrot.lane.b32.xlu0 %v1331, 24
        %v1409 = vpop.permute.xlu0 %1408
        %1410 = vrot.lane.b32.xlu0 %v1332, 24
        %v1411 = vpop.permute.xlu0 %1410
        %1412 = vrot.lane.b32.xlu0 %v1333, 24
        %v1413 = vpop.permute.xlu0 %1412
        %1414 = vrot.lane.b32.xlu0 %v1334, 24
        %v1415 = vpop.permute.xlu0 %1414
        %1416 = vrot.lane.b32.xlu0 %v1335, 24
        %v1417 = vpop.permute.xlu0 %1416
        %1418 = vrot.lane.b32.xlu0 %v1336, 24
        %v1419 = vpop.permute.xlu0 %1418
        %1420 = vrot.lane.b32.xlu0 %v1337, 24
        %v1421 = vpop.permute.xlu0 %1420
        %1422 = vrot.lane.b32.xlu0 %v1338, 24
        %v1423 = vpop.permute.xlu0 %1422
        %1424 = vrot.lane.b32.xlu0 %v1339, 24
        %v1425 = vpop.permute.xlu0 %1424
        %1426 = vrot.lane.b32.xlu0 %v1340, 24
        %v1427 = vpop.permute.xlu0 %1426
        %1428 = vrot.lane.b32.xlu0 %v1341, 24
        %v1429 = vpop.permute.xlu0 %1428
        %1430 = vrot.lane.b32.xlu0 %v1342, 24
        %v1431 = vpop.permute.xlu0 %1430
        %1432 = vrot.lane.b32.xlu0 %v1343, 24
        %v1433 = vpop.permute.xlu0 %1432
        %1434 = vrot.lane.b32.xlu0 %v1344, 24
        %v1435 = vpop.permute.xlu0 %1434
        %1436 = vrot.lane.b32.xlu0 %v1345, 24
        %v1437 = vpop.permute.xlu0 %1436
        %1438 = vrot.lane.b32.xlu0 %v1346, 24
        %v1439 = vpop.permute.xlu0 %1438
        %1440 = vrot.lane.b32.xlu0 %v1347, 24
        %v1441 = vpop.permute.xlu0 %1440
        %1442 = vrot.lane.b32.xlu0 %v1348, 24
        %v1443 = vpop.permute.xlu0 %1442
        %1444 = vrot.lane.b32.xlu0 %v1349, 24
        %v1445 = vpop.permute.xlu0 %1444
        %vm1478 = vcmask 228544
        %1479 = vst.msk [vmem:[#allocation3] sm:$0xff] %vm1478, %v1383
        %1480 = vst.msk [vmem:[#allocation3 + $0x8] sm:$0xff] %vm1478, %v1385
        %1481 = vst.msk [vmem:[#allocation3 + $0x10] sm:$0xff] %vm1478, %v1387
        %1482 = vst.msk [vmem:[#allocation3 + $0x18] sm:$0xff] %vm1478, %v1389
        %1483 = vst.msk [vmem:[#allocation3 + $0x20] sm:$0xff] %vm1478, %v1391
        %1484 = vst.msk [vmem:[#allocation3 + $0x28] sm:$0xff] %vm1478, %v1393
        %1485 = vst.msk [vmem:[#allocation3 + $0x30] sm:$0xff] %vm1478, %v1395
        %1486 = vst.msk [vmem:[#allocation3 + $0x38] sm:$0xff] %vm1478, %v1397
        %1487 = vst.msk [vmem:[#allocation3 + $0x40] sm:$0xff] %vm1478, %v1399
        %1488 = vst.msk [vmem:[#allocation3 + $0x48] sm:$0xff] %vm1478, %v1401
        %1489 = vst.msk [vmem:[#allocation3 + $0x50] sm:$0xff] %vm1478, %v1403
        %1490 = vst.msk [vmem:[#allocation3 + $0x58] sm:$0xff] %vm1478, %v1405
        %1491 = vst.msk [vmem:[#allocation3 + $0x60] sm:$0xff] %vm1478, %v1407
        %1492 = vst.msk [vmem:[#allocation3 + $0x68] sm:$0xff] %vm1478, %v1409
        %1493 = vst.msk [vmem:[#allocation3 + $0x70] sm:$0xff] %vm1478, %v1411
        %1494 = vst.msk [vmem:[#allocation3 + $0x78] sm:$0xff] %vm1478, %v1413
        %1495 = vst.msk [vmem:[#allocation3 + $0x80] sm:$0xff] %vm1478, %v1415
        %1496 = vst.msk [vmem:[#allocation3 + $0x88] sm:$0xff] %vm1478, %v1417
        %1497 = vst.msk [vmem:[#allocation3 + $0x90] sm:$0xff] %vm1478, %v1419
        %1498 = vst.msk [vmem:[#allocation3 + $0x98] sm:$0xff] %vm1478, %v1421
        %1499 = vst.msk [vmem:[#allocation3 + $0xa0] sm:$0xff] %vm1478, %v1423
        %1500 = vst.msk [vmem:[#allocation3 + $0xa8] sm:$0xff] %vm1478, %v1425
        %1501 = vst.msk [vmem:[#allocation3 + $0xb0] sm:$0xff] %vm1478, %v1427
        %1502 = vst.msk [vmem:[#allocation3 + $0xb8] sm:$0xff] %vm1478, %v1429
        %1503 = vst.msk [vmem:[#allocation3 + $0xc0] sm:$0xff] %vm1478, %v1431
        %1504 = vst.msk [vmem:[#allocation3 + $0xc8] sm:$0xff] %vm1478, %v1433
        %1505 = vst.msk [vmem:[#allocation3 + $0xd0] sm:$0xff] %vm1478, %v1435
        %1506 = vst.msk [vmem:[#allocation3 + $0xd8] sm:$0xff] %vm1478, %v1437
        %1507 = vst.msk [vmem:[#allocation3 + $0xe0] sm:$0xff] %vm1478, %v1439
        %1508 = vst.msk [vmem:[#allocation3 + $0xe8] sm:$0xff] %vm1478, %v1441
        %1509 = vst.msk [vmem:[#allocation3 + $0xf0] sm:$0xff] %vm1478, %v1443
        %1510 = vst.msk [vmem:[#allocation3 + $0xf8] sm:$0xff] %vm1478, %v1445
        %v1511 = vld [vmem:[%s1317 + $0x1] sm:$0xff]
        %v1512 = vld [vmem:[%s1317 + $0x9] sm:$0xff]
        %v1513 = vld [vmem:[%s1317 + $0x19] sm:$0xff]
        %v1514 = vld [vmem:[%s1317 + $0x21] sm:$0xff]
        %v1515 = vld [vmem:[%s1317 + $0x31] sm:$0xff]
        %v1516 = vld [vmem:[%s1317 + $0x39] sm:$0xff]
        %v1517 = vld [vmem:[%s1317 + $0x49] sm:$0xff]
        %v1518 = vld [vmem:[%s1317 + $0x51] sm:$0xff]
        %v1519 = vld [vmem:[%s1317 + $0x61] sm:$0xff]
        %v1520 = vld [vmem:[%s1317 + $0x69] sm:$0xff]
        %v1521 = vld [vmem:[%s1317 + $0x79] sm:$0xff]
        %v1522 = vld [vmem:[%s1317 + $0x81] sm:$0xff]
        %v1523 = vld [vmem:[%s1317 + $0x91] sm:$0xff]
        %v1524 = vld [vmem:[%s1317 + $0x99] sm:$0xff]
        %v1525 = vld [vmem:[%s1317 + $0xa9] sm:$0xff]
        %v1526 = vld [vmem:[%s1317 + $0xb1] sm:$0xff]
        %v1527 = vld [vmem:[%s1317 + $0xc1] sm:$0xff]
        %v1528 = vld [vmem:[%s1317 + $0xc9] sm:$0xff]
        %v1529 = vld [vmem:[%s1317 + $0xd9] sm:$0xff]
        %v1530 = vld [vmem:[%s1317 + $0xe1] sm:$0xff]
        %v1531 = vld [vmem:[%s1317 + $0xf1] sm:$0xff]
        %v1532 = vld [vmem:[%s1317 + $0xf9] sm:$0xff]
        %v1533 = vld [vmem:[%s1317 + $0x109] sm:$0xff]
        %v1534 = vld [vmem:[%s1317 + $0x111] sm:$0xff]
        %v1535 = vld [vmem:[%s1317 + $0x121] sm:$0xff]
        %v1536 = vld [vmem:[%s1317 + $0x129] sm:$0xff]
        %v1537 = vld [vmem:[%s1317 + $0x139] sm:$0xff]
        %v1538 = vld [vmem:[%s1317 + $0x141] sm:$0xff]
        %v1539 = vld [vmem:[%s1317 + $0x151] sm:$0xff]
        %v1540 = vld [vmem:[%s1317 + $0x159] sm:$0xff]
        %v1541 = vld [vmem:[%s1317 + $0x169] sm:$0xff]
        %v1542 = vld [vmem:[%s1317 + $0x171] sm:$0xff]
        %1575 = vrot.lane.b32.xlu0 %v1511, 28
        %v1576 = vpop.permute.xlu0 %1575
        %1577 = vrot.lane.b32.xlu0 %v1512, 28
        %v1578 = vpop.permute.xlu0 %1577
        %1579 = vrot.lane.b32.xlu0 %v1513, 28
        %v1580 = vpop.permute.xlu0 %1579
        %1581 = vrot.lane.b32.xlu0 %v1514, 28
        %v1582 = vpop.permute.xlu0 %1581
        %1583 = vrot.lane.b32.xlu0 %v1515, 28
        %v1584 = vpop.permute.xlu0 %1583
        %1585 = vrot.lane.b32.xlu0 %v1516, 28
        %v1586 = vpop.permute.xlu0 %1585
        %1587 = vrot.lane.b32.xlu0 %v1517, 28
        %v1588 = vpop.permute.xlu0 %1587
        %1589 = vrot.lane.b32.xlu0 %v1518, 28
        %v1590 = vpop.permute.xlu0 %1589
        %1591 = vrot.lane.b32.xlu0 %v1519, 28
        %v1592 = vpop.permute.xlu0 %1591
        %1593 = vrot.lane.b32.xlu0 %v1520, 28
        %v1594 = vpop.permute.xlu0 %1593
        %1595 = vrot.lane.b32.xlu0 %v1521, 28
        %v1596 = vpop.permute.xlu0 %1595
        %1597 = vrot.lane.b32.xlu0 %v1522, 28
        %v1598 = vpop.permute.xlu0 %1597
        %1599 = vrot.lane.b32.xlu0 %v1523, 28
        %v1600 = vpop.permute.xlu0 %1599
        %1601 = vrot.lane.b32.xlu0 %v1524, 28
        %v1602 = vpop.permute.xlu0 %1601
        %1603 = vrot.lane.b32.xlu0 %v1525, 28
        %v1604 = vpop.permute.xlu0 %1603
        %1605 = vrot.lane.b32.xlu0 %v1526, 28
        %v1606 = vpop.permute.xlu0 %1605
        %1607 = vrot.lane.b32.xlu0 %v1527, 28
        %v1608 = vpop.permute.xlu0 %1607
        %1609 = vrot.lane.b32.xlu0 %v1528, 28
        %v1610 = vpop.permute.xlu0 %1609
        %1611 = vrot.lane.b32.xlu0 %v1529, 28
        %v1612 = vpop.permute.xlu0 %1611
        %1613 = vrot.lane.b32.xlu0 %v1530, 28
        %v1614 = vpop.permute.xlu0 %1613
        %1615 = vrot.lane.b32.xlu0 %v1531, 28
        %v1616 = vpop.permute.xlu0 %1615
        %1617 = vrot.lane.b32.xlu0 %v1532, 28
        %v1618 = vpop.permute.xlu0 %1617
        %1619 = vrot.lane.b32.xlu0 %v1533, 28
        %v1620 = vpop.permute.xlu0 %1619
        %1621 = vrot.lane.b32.xlu0 %v1534, 28
        %v1622 = vpop.permute.xlu0 %1621
        %1623 = vrot.lane.b32.xlu0 %v1535, 28
        %v1624 = vpop.permute.xlu0 %1623
        %1625 = vrot.lane.b32.xlu0 %v1536, 28
        %v1626 = vpop.permute.xlu0 %1625
        %1627 = vrot.lane.b32.xlu0 %v1537, 28
        %v1628 = vpop.permute.xlu0 %1627
        %1629 = vrot.lane.b32.xlu0 %v1538, 28
        %v1630 = vpop.permute.xlu0 %1629
        %1631 = vrot.lane.b32.xlu0 %v1539, 28
        %v1632 = vpop.permute.xlu0 %1631
        %1633 = vrot.lane.b32.xlu0 %v1540, 28
        %v1634 = vpop.permute.xlu0 %1633
        %1635 = vrot.lane.b32.xlu0 %v1541, 28
        %v1636 = vpop.permute.xlu0 %1635
        %1637 = vrot.lane.b32.xlu0 %v1542, 28
        %v1638 = vpop.permute.xlu0 %1637
        %vm1671 = vcmask 261344
        %1672 = vst.msk [vmem:[#allocation3] sm:$0xff] %vm1671, %v1576
        %1673 = vst.msk [vmem:[#allocation3 + $0x8] sm:$0xff] %vm1671, %v1578
        %1674 = vst.msk [vmem:[#allocation3 + $0x10] sm:$0xff] %vm1671, %v1580
        %1675 = vst.msk [vmem:[#allocation3 + $0x18] sm:$0xff] %vm1671, %v1582
        %1676 = vst.msk [vmem:[#allocation3 + $0x20] sm:$0xff] %vm1671, %v1584
        %1677 = vst.msk [vmem:[#allocation3 + $0x28] sm:$0xff] %vm1671, %v1586
        %1678 = vst.msk [vmem:[#allocation3 + $0x30] sm:$0xff] %vm1671, %v1588
        %1679 = vst.msk [vmem:[#allocation3 + $0x38] sm:$0xff] %vm1671, %v1590
        %1680 = vst.msk [vmem:[#allocation3 + $0x40] sm:$0xff] %vm1671, %v1592
        %1681 = vst.msk [vmem:[#allocation3 + $0x48] sm:$0xff] %vm1671, %v1594
        %1682 = vst.msk [vmem:[#allocation3 + $0x50] sm:$0xff] %vm1671, %v1596
        %1683 = vst.msk [vmem:[#allocation3 + $0x58] sm:$0xff] %vm1671, %v1598
        %1684 = vst.msk [vmem:[#allocation3 + $0x60] sm:$0xff] %vm1671, %v1600
        %1685 = vst.msk [vmem:[#allocation3 + $0x68] sm:$0xff] %vm1671, %v1602
        %1686 = vst.msk [vmem:[#allocation3 + $0x70] sm:$0xff] %vm1671, %v1604
        %1687 = vst.msk [vmem:[#allocation3 + $0x78] sm:$0xff] %vm1671, %v1606
        %1688 = vst.msk [vmem:[#allocation3 + $0x80] sm:$0xff] %vm1671, %v1608
        %1689 = vst.msk [vmem:[#allocation3 + $0x88] sm:$0xff] %vm1671, %v1610
        %1690 = vst.msk [vmem:[#allocation3 + $0x90] sm:$0xff] %vm1671, %v1612
        %1691 = vst.msk [vmem:[#allocation3 + $0x98] sm:$0xff] %vm1671, %v1614
        %1692 = vst.msk [vmem:[#allocation3 + $0xa0] sm:$0xff] %vm1671, %v1616
        %1693 = vst.msk [vmem:[#allocation3 + $0xa8] sm:$0xff] %vm1671, %v1618
        %1694 = vst.msk [vmem:[#allocation3 + $0xb0] sm:$0xff] %vm1671, %v1620
        %1695 = vst.msk [vmem:[#allocation3 + $0xb8] sm:$0xff] %vm1671, %v1622
        %1696 = vst.msk [vmem:[#allocation3 + $0xc0] sm:$0xff] %vm1671, %v1624
        %1697 = vst.msk [vmem:[#allocation3 + $0xc8] sm:$0xff] %vm1671, %v1626
        %1698 = vst.msk [vmem:[#allocation3 + $0xd0] sm:$0xff] %vm1671, %v1628
        %1699 = vst.msk [vmem:[#allocation3 + $0xd8] sm:$0xff] %vm1671, %v1630
        %1700 = vst.msk [vmem:[#allocation3 + $0xe0] sm:$0xff] %vm1671, %v1632
        %1701 = vst.msk [vmem:[#allocation3 + $0xe8] sm:$0xff] %vm1671, %v1634
        %1702 = vst.msk [vmem:[#allocation3 + $0xf0] sm:$0xff] %vm1671, %v1636
        %1703 = vst.msk [vmem:[#allocation3 + $0xf8] sm:$0xff] %vm1671, %v1638
        %v1704 = vld [vmem:[%s1317 + $0x2] sm:$0xff]
        %v1705 = vld [vmem:[%s1317 + $0xa] sm:$0xff]
        %v1706 = vld [vmem:[%s1317 + $0x1a] sm:$0xff]
        %v1707 = vld [vmem:[%s1317 + $0x22] sm:$0xff]
        %v1708 = vld [vmem:[%s1317 + $0x32] sm:$0xff]
        %v1709 = vld [vmem:[%s1317 + $0x3a] sm:$0xff]
        %v1710 = vld [vmem:[%s1317 + $0x4a] sm:$0xff]
        %v1711 = vld [vmem:[%s1317 + $0x52] sm:$0xff]
        %v1712 = vld [vmem:[%s1317 + $0x62] sm:$0xff]
        %v1713 = vld [vmem:[%s1317 + $0x6a] sm:$0xff]
        %v1714 = vld [vmem:[%s1317 + $0x7a] sm:$0xff]
        %v1715 = vld [vmem:[%s1317 + $0x82] sm:$0xff]
        %v1716 = vld [vmem:[%s1317 + $0x92] sm:$0xff]
        %v1717 = vld [vmem:[%s1317 + $0x9a] sm:$0xff]
        %v1718 = vld [vmem:[%s1317 + $0xaa] sm:$0xff]
        %v1719 = vld [vmem:[%s1317 + $0xb2] sm:$0xff]
        %v1720 = vld [vmem:[%s1317 + $0xc2] sm:$0xff]
        %v1721 = vld [vmem:[%s1317 + $0xca] sm:$0xff]
        %v1722 = vld [vmem:[%s1317 + $0xda] sm:$0xff]
        %v1723 = vld [vmem:[%s1317 + $0xe2] sm:$0xff]
        %v1724 = vld [vmem:[%s1317 + $0xf2] sm:$0xff]
        %v1725 = vld [vmem:[%s1317 + $0xfa] sm:$0xff]
        %v1726 = vld [vmem:[%s1317 + $0x10a] sm:$0xff]
        %v1727 = vld [vmem:[%s1317 + $0x112] sm:$0xff]
        %v1728 = vld [vmem:[%s1317 + $0x122] sm:$0xff]
        %v1729 = vld [vmem:[%s1317 + $0x12a] sm:$0xff]
        %v1730 = vld [vmem:[%s1317 + $0x13a] sm:$0xff]
        %v1731 = vld [vmem:[%s1317 + $0x142] sm:$0xff]
        %v1732 = vld [vmem:[%s1317 + $0x152] sm:$0xff]
        %v1733 = vld [vmem:[%s1317 + $0x15a] sm:$0xff]
        %v1734 = vld [vmem:[%s1317 + $0x16a] sm:$0xff]
        %v1735 = vld [vmem:[%s1317 + $0x172] sm:$0xff]
        %1768 = vrot.lane.b32.xlu0 %v1704, 32
        %v1769 = vpop.permute.xlu0 %1768
        %1770 = vrot.lane.b32.xlu0 %v1705, 32
        %v1771 = vpop.permute.xlu0 %1770
        %1772 = vrot.lane.b32.xlu0 %v1706, 32
        %v1773 = vpop.permute.xlu0 %1772
        %1774 = vrot.lane.b32.xlu0 %v1707, 32
        %v1775 = vpop.permute.xlu0 %1774
        %1776 = vrot.lane.b32.xlu0 %v1708, 32
        %v1777 = vpop.permute.xlu0 %1776
        %1778 = vrot.lane.b32.xlu0 %v1709, 32
        %v1779 = vpop.permute.xlu0 %1778
        %1780 = vrot.lane.b32.xlu0 %v1710, 32
        %v1781 = vpop.permute.xlu0 %1780
        %1782 = vrot.lane.b32.xlu0 %v1711, 32
        %v1783 = vpop.permute.xlu0 %1782
        %1784 = vrot.lane.b32.xlu0 %v1712, 32
        %v1785 = vpop.permute.xlu0 %1784
        %1786 = vrot.lane.b32.xlu0 %v1713, 32
        %v1787 = vpop.permute.xlu0 %1786
        %1788 = vrot.lane.b32.xlu0 %v1714, 32
        %v1789 = vpop.permute.xlu0 %1788
        %1790 = vrot.lane.b32.xlu0 %v1715, 32
        %v1791 = vpop.permute.xlu0 %1790
        %1792 = vrot.lane.b32.xlu0 %v1716, 32
        %v1793 = vpop.permute.xlu0 %1792
        %1794 = vrot.lane.b32.xlu0 %v1717, 32
        %v1795 = vpop.permute.xlu0 %1794
        %1796 = vrot.lane.b32.xlu0 %v1718, 32
        %v1797 = vpop.permute.xlu0 %1796
        %1798 = vrot.lane.b32.xlu0 %v1719, 32
        %v1799 = vpop.permute.xlu0 %1798
        %1800 = vrot.lane.b32.xlu0 %v1720, 32
        %v1801 = vpop.permute.xlu0 %1800
        %1802 = vrot.lane.b32.xlu0 %v1721, 32
        %v1803 = vpop.permute.xlu0 %1802
        %1804 = vrot.lane.b32.xlu0 %v1722, 32
        %v1805 = vpop.permute.xlu0 %1804
        %1806 = vrot.lane.b32.xlu0 %v1723, 32
        %v1807 = vpop.permute.xlu0 %1806
        %1808 = vrot.lane.b32.xlu0 %v1724, 32
        %v1809 = vpop.permute.xlu0 %1808
        %1810 = vrot.lane.b32.xlu0 %v1725, 32
        %v1811 = vpop.permute.xlu0 %1810
        %1812 = vrot.lane.b32.xlu0 %v1726, 32
        %v1813 = vpop.permute.xlu0 %1812
        %1814 = vrot.lane.b32.xlu0 %v1727, 32
        %v1815 = vpop.permute.xlu0 %1814
        %1816 = vrot.lane.b32.xlu0 %v1728, 32
        %v1817 = vpop.permute.xlu0 %1816
        %1818 = vrot.lane.b32.xlu0 %v1729, 32
        %v1819 = vpop.permute.xlu0 %1818
        %1820 = vrot.lane.b32.xlu0 %v1730, 32
        %v1821 = vpop.permute.xlu0 %1820
        %1822 = vrot.lane.b32.xlu0 %v1731, 32
        %v1823 = vpop.permute.xlu0 %1822
        %1824 = vrot.lane.b32.xlu0 %v1732, 32
        %v1825 = vpop.permute.xlu0 %1824
        %1826 = vrot.lane.b32.xlu0 %v1733, 32
        %v1827 = vpop.permute.xlu0 %1826
        %1828 = vrot.lane.b32.xlu0 %v1734, 32
        %v1829 = vpop.permute.xlu0 %1828
        %1830 = vrot.lane.b32.xlu0 %v1735, 32
        %v1831 = vpop.permute.xlu0 %1830
        %vm1864 = vcmask 294144
        %1865 = vst.msk [vmem:[#allocation3] sm:$0xff] %vm1864, %v1769
        %1866 = vst.msk [vmem:[#allocation3 + $0x8] sm:$0xff] %vm1864, %v1771
        %1867 = vst.msk [vmem:[#allocation3 + $0x10] sm:$0xff] %vm1864, %v1773
        %1868 = vst.msk [vmem:[#allocation3 + $0x18] sm:$0xff] %vm1864, %v1775
        %1869 = vst.msk [vmem:[#allocation3 + $0x20] sm:$0xff] %vm1864, %v1777
        %1870 = vst.msk [vmem:[#allocation3 + $0x28] sm:$0xff] %vm1864, %v1779
        %1871 = vst.msk [vmem:[#allocation3 + $0x30] sm:$0xff] %vm1864, %v1781
        %1872 = vst.msk [vmem:[#allocation3 + $0x38] sm:$0xff] %vm1864, %v1783
        %1873 = vst.msk [vmem:[#allocation3 + $0x40] sm:$0xff] %vm1864, %v1785
        %1874 = vst.msk [vmem:[#allocation3 + $0x48] sm:$0xff] %vm1864, %v1787
        %1875 = vst.msk [vmem:[#allocation3 + $0x50] sm:$0xff] %vm1864, %v1789
        %1876 = vst.msk [vmem:[#allocation3 + $0x58] sm:$0xff] %vm1864, %v1791
        %1877 = vst.msk [vmem:[#allocation3 + $0x60] sm:$0xff] %vm1864, %v1793
        %1878 = vst.msk [vmem:[#allocation3 + $0x68] sm:$0xff] %vm1864, %v1795
        %1879 = vst.msk [vmem:[#allocation3 + $0x70] sm:$0xff] %vm1864, %v1797
        %1880 = vst.msk [vmem:[#allocation3 + $0x78] sm:$0xff] %vm1864, %v1799
        %1881 = vst.msk [vmem:[#allocation3 + $0x80] sm:$0xff] %vm1864, %v1801
        %1882 = vst.msk [vmem:[#allocation3 + $0x88] sm:$0xff] %vm1864, %v1803
        %1883 = vst.msk [vmem:[#allocation3 + $0x90] sm:$0xff] %vm1864, %v1805
        %1884 = vst.msk [vmem:[#allocation3 + $0x98] sm:$0xff] %vm1864, %v1807
        %1885 = vst.msk [vmem:[#allocation3 + $0xa0] sm:$0xff] %vm1864, %v1809
        %1886 = vst.msk [vmem:[#allocation3 + $0xa8] sm:$0xff] %vm1864, %v1811
        %1887 = vst.msk [vmem:[#allocation3 + $0xb0] sm:$0xff] %vm1864, %v1813
        %1888 = vst.msk [vmem:[#allocation3 + $0xb8] sm:$0xff] %vm1864, %v1815
        %1889 = vst.msk [vmem:[#allocation3 + $0xc0] sm:$0xff] %vm1864, %v1817
        %1890 = vst.msk [vmem:[#allocation3 + $0xc8] sm:$0xff] %vm1864, %v1819
        %1891 = vst.msk [vmem:[#allocation3 + $0xd0] sm:$0xff] %vm1864, %v1821
        %1892 = vst.msk [vmem:[#allocation3 + $0xd8] sm:$0xff] %vm1864, %v1823
        %1893 = vst.msk [vmem:[#allocation3 + $0xe0] sm:$0xff] %vm1864, %v1825
        %1894 = vst.msk [vmem:[#allocation3 + $0xe8] sm:$0xff] %vm1864, %v1827
        %1895 = vst.msk [vmem:[#allocation3 + $0xf0] sm:$0xff] %vm1864, %v1829
        %1896 = vst.msk [vmem:[#allocation3 + $0xf8] sm:$0xff] %vm1864, %v1831
        %v1897 = vld [vmem:[#allocation3] sm:$0xff]
        %v1898 = vld [vmem:[#allocation3 + $0x8] sm:$0xff]
        %v1899 = vld [vmem:[#allocation3 + $0x10] sm:$0xff]
        %v1900 = vld [vmem:[#allocation3 + $0x18] sm:$0xff]
        %v1901 = vld [vmem:[#allocation3 + $0x20] sm:$0xff]
        %v1902 = vld [vmem:[#allocation3 + $0x28] sm:$0xff]
        %v1903 = vld [vmem:[#allocation3 + $0x30] sm:$0xff]
        %v1904 = vld [vmem:[#allocation3 + $0x38] sm:$0xff]
        %v1905 = vld [vmem:[#allocation3 + $0x40] sm:$0xff]
        %v1906 = vld [vmem:[#allocation3 + $0x48] sm:$0xff]
        %v1907 = vld [vmem:[#allocation3 + $0x50] sm:$0xff]
        %v1908 = vld [vmem:[#allocation3 + $0x58] sm:$0xff]
        %v1909 = vld [vmem:[#allocation3 + $0x60] sm:$0xff]
        %v1910 = vld [vmem:[#allocation3 + $0x68] sm:$0xff]
        %v1911 = vld [vmem:[#allocation3 + $0x70] sm:$0xff]
        %v1912 = vld [vmem:[#allocation3 + $0x78] sm:$0xff]
        %v1913 = vld [vmem:[#allocation3 + $0x80] sm:$0xff]
        %v1914 = vld [vmem:[#allocation3 + $0x88] sm:$0xff]
        %v1915 = vld [vmem:[#allocation3 + $0x90] sm:$0xff]
        %v1916 = vld [vmem:[#allocation3 + $0x98] sm:$0xff]
        %v1917 = vld [vmem:[#allocation3 + $0xa0] sm:$0xff]
        %v1918 = vld [vmem:[#allocation3 + $0xa8] sm:$0xff]
        %v1919 = vld [vmem:[#allocation3 + $0xb0] sm:$0xff]
        %v1920 = vld [vmem:[#allocation3 + $0xb8] sm:$0xff]
        %v1921 = vld [vmem:[#allocation3 + $0xc0] sm:$0xff]
        %v1922 = vld [vmem:[#allocation3 + $0xc8] sm:$0xff]
        %v1923 = vld [vmem:[#allocation3 + $0xd0] sm:$0xff]
        %v1924 = vld [vmem:[#allocation3 + $0xd8] sm:$0xff]
        %v1925 = vld [vmem:[#allocation3 + $0xe0] sm:$0xff]
        %v1926 = vld [vmem:[#allocation3 + $0xe8] sm:$0xff]
        %v1927 = vld [vmem:[#allocation3 + $0xf0] sm:$0xff]
        %v1928 = vld [vmem:[#allocation3 + $0xf8] sm:$0xff]
        %v1929 = vpack.c.bf16 %v1898, %v1897
        %v1930 = vpack.c.bf16 %v1900, %v1899
        %v1931 = vpack.c.bf16 %v1902, %v1901
        %v1932 = vpack.c.bf16 %v1904, %v1903
        %v1933 = vpack.c.bf16 %v1906, %v1905
        %v1934 = vpack.c.bf16 %v1908, %v1907
        %v1935 = vpack.c.bf16 %v1910, %v1909
        %v1936 = vpack.c.bf16 %v1912, %v1911
        %v1937 = vpack.c.bf16 %v1914, %v1913
        %v1938 = vpack.c.bf16 %v1916, %v1915
        %v1939 = vpack.c.bf16 %v1918, %v1917
        %v1940 = vpack.c.bf16 %v1920, %v1919
        %v1941 = vpack.c.bf16 %v1922, %v1921
        %v1942 = vpack.c.bf16 %v1924, %v1923
        %v1943 = vpack.c.bf16 %v1926, %v1925
        %v1944 = vpack.c.bf16 %v1928, %v1927
        %v1945 = vld [vmem:[%s1] sm:$0xf]
        %v1946 = vld [vmem:[%s1 + $0x4] sm:$0xf]
        %v1947 = vld [vmem:[%s1 + $0x8] sm:$0xf]
        %v1948 = vld [vmem:[%s1 + $0xc] sm:$0xf]
        %v1949 = vld [vmem:[%s1 + $0x10] sm:$0x3]
        %v1955 = vunpack.c.l.b16 %v1945
        %v1956 = vunpack.c.l.b16 %v1946
        %v1957 = vunpack.c.l.b16 %v1947
        %v1958 = vunpack.c.l.b16 %v1948
        %v1959 = vunpack.c.l.b16 %v1949
        %v1960 = vpack.c.b16 %v1956, %v1955
        %v1961 = vpack.c.b16 %v1958, %v1957
        %v1962 = vpack.c.b16 %v1959, %v1959
        %vm1965 = vcmask 293888
        %v1967 = vsel %vm1965, %v1929, 0
        %v1970 = vsel %vm1965, %v1930, 0
        %v1973 = vsel %vm1965, %v1931, 0
        %v1976 = vsel %vm1965, %v1932, 0
        %v1979 = vsel %vm1965, %v1933, 0
        %v1982 = vsel %vm1965, %v1934, 0
        %v1985 = vsel %vm1965, %v1935, 0
        %v1988 = vsel %vm1965, %v1936, 0
        %v1991 = vsel %vm1965, %v1937, 0
        %v1994 = vsel %vm1965, %v1938, 0
        %v1997 = vsel %vm1965, %v1939, 0
        %v2000 = vsel %vm1965, %v1940, 0
        %v2003 = vsel %vm1965, %v1941, 0
        %v2006 = vsel %vm1965, %v1942, 0
        %v2009 = vsel %vm1965, %v1943, 0
        %v2012 = vsel %vm1965, %v1944, 0
        %vm2014 = vcmask 1041408
        %v2016 = vsel %vm2014, %v1962, 0
        %2018 = vmatprep.subr.bf16.mxu0 0
        %2019 = vmatpush1.bf16.msra.mxu0 %v1960
        %2020 = vmatprep.subr.bf16.mxu0 0
        %2021 = vmatpush1.bf16.msra.mxu0 %v1961
        %2022 = vmatprep.subr.bf16.mxu0 0
        %2023 = vmatpush1.bf16.msra.mxu0 %v2016
        %2024 = vmatprep.subr.bf16.mxu0 0
        %2025 = vmatpush1.bf16.msra.mxu0 0
        %2026 = vmatprep.subr.bf16.mxu0 0
        %2027 = vmatpush1.bf16.msra.mxu0 0
        %2028 = vmatprep.subr.bf16.mxu0 0
        %2029 = vmatpush1.bf16.msra.mxu0 0
        %2030 = vmatprep.subr.bf16.mxu0 0
        %2031 = vmatpush1.bf16.msra.mxu0 0
        %2032 = vmatprep.subr.bf16.mxu0 0
        %2033 = vmatpush1.bf16.msra.mxu0 0
        %2034 = vmatprep.subr.bf16.mxu0 0
        %2035 = vmatpush1.bf16.msra.mxu0 0
        %2036 = vmatprep.subr.bf16.mxu0 0
        %2037 = vmatpush1.bf16.msra.mxu0 0
        %2038 = vmatprep.subr.bf16.mxu0 0
        %2039 = vmatpush1.bf16.msra.mxu0 0
        %2040 = vmatprep.subr.bf16.mxu0 0
        %2041 = vmatpush1.bf16.msra.mxu0 0
        %2042 = vmatprep.subr.bf16.mxu0 0
        %2043 = vmatpush1.bf16.msra.mxu0 0
        %2044 = vmatprep.subr.bf16.mxu0 0
        %2045 = vmatpush1.bf16.msra.mxu0 0
        %2046 = vmatprep.subr.bf16.mxu0 0
        %2047 = vmatpush1.bf16.msra.mxu0 0
        %2048 = vmatprep.subr.bf16.mxu0 0
        %2049 = vmatpush1.bf16.msra.mxu0 0
        %2050 = vmatprep.mubr.bf16.mxu0 0
        %2051 = vmatmul.mubr.bf16.gmra.mrb[0].mxu0 %v1967
        %v2052 = vpop.f32.mrb[0].mxu0
        %v2053 = vadd.f32 0.0, %v2052
        %v2054 = vpop.f32.mrb[0].mxu0
        %v2055 = vpop.f32.mrb[0].mxu0
        %v2056 = vadd.f32 0.0, %v2055
        %v2057 = vpop.f32.mrb[0].mxu0
        %2058 = vmatprep.mubr.bf16.mxu0 0
        %2059 = vmatmul.mubr.bf16.gmra.mrb[0].mxu0 %v1970
        %v2060 = vpop.f32.mrb[0].mxu0
        %v2061 = vadd.f32 0.0, %v2060
        %v2062 = vpop.f32.mrb[0].mxu0
        %v2063 = vpop.f32.mrb[0].mxu0
        %v2064 = vadd.f32 0.0, %v2063
        %v2065 = vpop.f32.mrb[0].mxu0
        %2066 = vmatprep.mubr.bf16.mxu0 0
        %2067 = vmatmul.mubr.bf16.gmra.mrb[0].mxu0 %v1973
        %v2068 = vpop.f32.mrb[0].mxu0
        %v2069 = vadd.f32 0.0, %v2068
        %v2070 = vpop.f32.mrb[0].mxu0
        %v2071 = vpop.f32.mrb[0].mxu0
        %v2072 = vadd.f32 0.0, %v2071
        %v2073 = vpop.f32.mrb[0].mxu0
        %2074 = vmatprep.mubr.bf16.mxu0 0
        %2075 = vmatmul.mubr.bf16.gmra.mrb[0].mxu0 %v1976
        %v2076 = vpop.f32.mrb[0].mxu0
        %v2077 = vadd.f32 0.0, %v2076
        %v2078 = vpop.f32.mrb[0].mxu0
        %v2079 = vpop.f32.mrb[0].mxu0
        %v2080 = vadd.f32 0.0, %v2079
        %v2081 = vpop.f32.mrb[0].mxu0
        %2082 = vmatprep.mubr.bf16.mxu0 0
        %2083 = vmatmul.mubr.bf16.gmra.mrb[0].mxu0 %v1979
        %v2084 = vpop.f32.mrb[0].mxu0
        %v2085 = vadd.f32 0.0, %v2084
        %v2086 = vpop.f32.mrb[0].mxu0
        %v2087 = vpop.f32.mrb[0].mxu0
        %v2088 = vadd.f32 0.0, %v2087
        %v2089 = vpop.f32.mrb[0].mxu0
        %2090 = vmatprep.mubr.bf16.mxu0 0
        %2091 = vmatmul.mubr.bf16.gmra.mrb[0].mxu0 %v1982
        %v2092 = vpop.f32.mrb[0].mxu0
        %v2093 = vadd.f32 0.0, %v2092
        %v2094 = vpop.f32.mrb[0].mxu0
        %v2095 = vpop.f32.mrb[0].mxu0
        %v2096 = vadd.f32 0.0, %v2095
        %v2097 = vpop.f32.mrb[0].mxu0
        %2098 = vmatprep.mubr.bf16.mxu0 0
        %2099 = vmatmul.mubr.bf16.gmra.mrb[0].mxu0 %v1985
        %v2100 = vpop.f32.mrb[0].mxu0
        %v2101 = vadd.f32 0.0, %v2100
        %v2102 = vpop.f32.mrb[0].mxu0
        %v2103 = vpop.f32.mrb[0].mxu0
        %v2104 = vadd.f32 0.0, %v2103
        %v2105 = vpop.f32.mrb[0].mxu0
        %2106 = vmatprep.mubr.bf16.mxu0 0
        %2107 = vmatmul.mubr.bf16.gmra.mrb[0].mxu0 %v1988
        %v2108 = vpop.f32.mrb[0].mxu0
        %v2109 = vadd.f32 0.0, %v2108
        %v2110 = vpop.f32.mrb[0].mxu0
        %v2111 = vpop.f32.mrb[0].mxu0
        %v2112 = vadd.f32 0.0, %v2111
        %v2113 = vpop.f32.mrb[0].mxu0
        %2114 = vmatprep.mubr.bf16.mxu0 0
        %2115 = vmatmul.mubr.bf16.gmra.mrb[0].mxu0 %v1991
        %v2116 = vpop.f32.mrb[0].mxu0
        %v2117 = vadd.f32 0.0, %v2116
        %v2118 = vpop.f32.mrb[0].mxu0
        %v2119 = vpop.f32.mrb[0].mxu0
        %v2120 = vadd.f32 0.0, %v2119
        %v2121 = vpop.f32.mrb[0].mxu0
        %2122 = vmatprep.mubr.bf16.mxu0 0
        %2123 = vmatmul.mubr.bf16.gmra.mrb[0].mxu0 %v1994
        %v2124 = vpop.f32.mrb[0].mxu0
        %v2125 = vadd.f32 0.0, %v2124
        %v2126 = vpop.f32.mrb[0].mxu0
        %v2127 = vpop.f32.mrb[0].mxu0
        %v2128 = vadd.f32 0.0, %v2127
        %v2129 = vpop.f32.mrb[0].mxu0
        %2130 = vmatprep.mubr.bf16.mxu0 0
        %2131 = vmatmul.mubr.bf16.gmra.mrb[0].mxu0 %v1997
        %v2132 = vpop.f32.mrb[0].mxu0
        %v2133 = vadd.f32 0.0, %v2132
        %v2134 = vpop.f32.mrb[0].mxu0
        %v2135 = vpop.f32.mrb[0].mxu0
        %v2136 = vadd.f32 0.0, %v2135
        %v2137 = vpop.f32.mrb[0].mxu0
        %2138 = vmatprep.mubr.bf16.mxu0 0
        %2139 = vmatmul.mubr.bf16.gmra.mrb[0].mxu0 %v2000
        %v2140 = vpop.f32.mrb[0].mxu0
        %v2141 = vadd.f32 0.0, %v2140
        %v2142 = vpop.f32.mrb[0].mxu0
        %v2143 = vpop.f32.mrb[0].mxu0
        %v2144 = vadd.f32 0.0, %v2143
        %v2145 = vpop.f32.mrb[0].mxu0
        %2146 = vmatprep.mubr.bf16.mxu0 0
        %2147 = vmatmul.mubr.bf16.gmra.mrb[0].mxu0 %v2003
        %v2148 = vpop.f32.mrb[0].mxu0
        %v2149 = vadd.f32 0.0, %v2148
        %v2150 = vpop.f32.mrb[0].mxu0
        %v2151 = vpop.f32.mrb[0].mxu0
        %v2152 = vadd.f32 0.0, %v2151
        %v2153 = vpop.f32.mrb[0].mxu0
        %2154 = vmatprep.mubr.bf16.mxu0 0
        %2155 = vmatmul.mubr.bf16.gmra.mrb[0].mxu0 %v2006
        %v2156 = vpop.f32.mrb[0].mxu0
        %v2157 = vadd.f32 0.0, %v2156
        %v2158 = vpop.f32.mrb[0].mxu0
        %v2159 = vpop.f32.mrb[0].mxu0
        %v2160 = vadd.f32 0.0, %v2159
        %v2161 = vpop.f32.mrb[0].mxu0
        %2162 = vmatprep.mubr.bf16.mxu0 0
        %2163 = vmatmul.mubr.bf16.gmra.mrb[0].mxu0 %v2009
        %v2164 = vpop.f32.mrb[0].mxu0
        %v2165 = vadd.f32 0.0, %v2164
        %v2166 = vpop.f32.mrb[0].mxu0
        %v2167 = vpop.f32.mrb[0].mxu0
        %v2168 = vadd.f32 0.0, %v2167
        %v2169 = vpop.f32.mrb[0].mxu0
        %2170 = vmatprep.mubr.bf16.mxu0 0
        %2171 = vmatmul.mubr.bf16.gmra.mrb[0].mxu0 %v2012
        %v2172 = vpop.f32.mrb[0].mxu0
        %v2173 = vadd.f32 0.0, %v2172
        %v2174 = vpop.f32.mrb[0].mxu0
        %v2175 = vpop.f32.mrb[0].mxu0
        %v2176 = vadd.f32 0.0, %v2175
        %v2177 = vpop.f32.mrb[0].mxu0
        %2178 = vdwg.mxu0
        %v2179 = vadd.f32 %v2053, %v2056
        %v2180 = vadd.f32 %v2179, %v2061
        %v2181 = vadd.f32 %v2180, %v2064
        %v2182 = vadd.f32 %v2181, %v2069
        %v2183 = vadd.f32 %v2182, %v2072
        %v2184 = vadd.f32 %v2183, %v2077
        %v2185 = vadd.f32 %v2184, %v2080
        %v2186 = vadd.f32 %v2185, %v2085
        %v2187 = vadd.f32 %v2186, %v2088
        %v2188 = vadd.f32 %v2187, %v2093
        %v2189 = vadd.f32 %v2188, %v2096
        %v2190 = vadd.f32 %v2189, %v2101
        %v2191 = vadd.f32 %v2190, %v2104
        %v2192 = vadd.f32 %v2191, %v2109
        %v2193 = vadd.f32 %v2192, %v2112
        %v2194 = vadd.f32 %v2193, %v2117
        %v2195 = vadd.f32 %v2194, %v2120
        %v2196 = vadd.f32 %v2195, %v2125
        %v2197 = vadd.f32 %v2196, %v2128
        %v2198 = vadd.f32 %v2197, %v2133
        %v2199 = vadd.f32 %v2198, %v2136
        %v2200 = vadd.f32 %v2199, %v2141
        %v2201 = vadd.f32 %v2200, %v2144
        %v2202 = vadd.f32 %v2201, %v2149
        %v2203 = vadd.f32 %v2202, %v2152
        %v2204 = vadd.f32 %v2203, %v2157
        %v2205 = vadd.f32 %v2204, %v2160
        %v2206 = vadd.f32 %v2205, %v2165
        %v2207 = vadd.f32 %v2206, %v2168
        %v2208 = vadd.f32 %v2207, %v2173
        %v2209 = vadd.f32 %v2208, %v2176
        %v2210 = vrot.slane %v2209, 4
        %v2211 = vadd.f32 %v2209, %v2210
        %v2212 = vrot.slane %v2211, 2
        %v2213 = vadd.f32 %v2211, %v2212
        %v2214 = vrot.slane %v2213, 1
        %v2215 = vadd.f32 %v2213, %v2214
        %2216 = vst [vmem:[%s174] sm:$0x1] %v2215
        %v2217 = vmul.f32 %v2053, %v2053
        %v2218 = vmul.f32 %v2056, %v2056
        %v2219 = vmul.f32 %v2061, %v2061
        %v2220 = vmul.f32 %v2064, %v2064
        %v2221 = vmul.f32 %v2069, %v2069
        %v2222 = vmul.f32 %v2072, %v2072
        %v2223 = vmul.f32 %v2077, %v2077
        %v2224 = vmul.f32 %v2080, %v2080
        %v2225 = vmul.f32 %v2085, %v2085
        %v2226 = vmul.f32 %v2088, %v2088
        %v2227 = vmul.f32 %v2093, %v2093
        %v2228 = vmul.f32 %v2096, %v2096
        %v2229 = vmul.f32 %v2101, %v2101
        %v2230 = vmul.f32 %v2104, %v2104
        %v2231 = vmul.f32 %v2109, %v2109
        %v2232 = vmul.f32 %v2112, %v2112
        %v2233 = vmul.f32 %v2117, %v2117
        %v2234 = vmul.f32 %v2120, %v2120
        %v2235 = vmul.f32 %v2125, %v2125
        %v2236 = vmul.f32 %v2128, %v2128
        %v2237 = vmul.f32 %v2133, %v2133
        %v2238 = vmul.f32 %v2136, %v2136
        %v2239 = vmul.f32 %v2141, %v2141
        %v2240 = vmul.f32 %v2144, %v2144
        %v2241 = vmul.f32 %v2149, %v2149
        %v2242 = vmul.f32 %v2152, %v2152
        %v2243 = vmul.f32 %v2157, %v2157
        %v2244 = vmul.f32 %v2160, %v2160
        %v2245 = vmul.f32 %v2165, %v2165
        %v2246 = vmul.f32 %v2168, %v2168
        %v2247 = vmul.f32 %v2173, %v2173
        %v2248 = vmul.f32 %v2176, %v2176
        %v2249 = vadd.f32 %v2217, %v2218
        %v2250 = vadd.f32 %v2249, %v2219
        %v2251 = vadd.f32 %v2250, %v2220
        %v2252 = vadd.f32 %v2251, %v2221
        %v2253 = vadd.f32 %v2252, %v2222
        %v2254 = vadd.f32 %v2253, %v2223
        %v2255 = vadd.f32 %v2254, %v2224
        %v2256 = vadd.f32 %v2255, %v2225
        %v2257 = vadd.f32 %v2256, %v2226
        %v2258 = vadd.f32 %v2257, %v2227
        %v2259 = vadd.f32 %v2258, %v2228
        %v2260 = vadd.f32 %v2259, %v2229
        %v2261 = vadd.f32 %v2260, %v2230
        %v2262 = vadd.f32 %v2261, %v2231
        %v2263 = vadd.f32 %v2262, %v2232
        %v2264 = vadd.f32 %v2263, %v2233
        %v2265 = vadd.f32 %v2264, %v2234
        %v2266 = vadd.f32 %v2265, %v2235
        %v2267 = vadd.f32 %v2266, %v2236
        %v2268 = vadd.f32 %v2267, %v2237
        %v2269 = vadd.f32 %v2268, %v2238
        %v2270 = vadd.f32 %v2269, %v2239
        %v2271 = vadd.f32 %v2270, %v2240
        %v2272 = vadd.f32 %v2271, %v2241
        %v2273 = vadd.f32 %v2272, %v2242
        %v2274 = vadd.f32 %v2273, %v2243
        %v2275 = vadd.f32 %v2274, %v2244
        %v2276 = vadd.f32 %v2275, %v2245
        %v2277 = vadd.f32 %v2276, %v2246
        %v2278 = vadd.f32 %v2277, %v2247
        %v2279 = vadd.f32 %v2278, %v2248
        %v2280 = vrot.slane %v2279, 4
        %v2281 = vadd.f32 %v2279, %v2280
        %v2282 = vrot.slane %v2281, 2
        %v2283 = vadd.f32 %v2281, %v2282
        %v2284 = vrot.slane %v2283, 1
        %v2285 = vadd.f32 %v2283, %v2284
        %2286 = vst [vmem:[%s174 + $0x1] sm:$0x1] %v2285
        %2287 = vst [vmem:[%s167] sm:$0xff] %v2053
        %2288 = vst [vmem:[%s167 + $0x8] sm:$0xff] %v2056
        %2289 = vst [vmem:[%s167 + $0x10] sm:$0xff] %v2061
        %2290 = vst [vmem:[%s167 + $0x18] sm:$0xff] %v2064
        %2291 = vst [vmem:[%s167 + $0x20] sm:$0xff] %v2069
        %2292 = vst [vmem:[%s167 + $0x28] sm:$0xff] %v2072
        %2293 = vst [vmem:[%s167 + $0x30] sm:$0xff] %v2077
        %2294 = vst [vmem:[%s167 + $0x38] sm:$0xff] %v2080
        %2295 = vst [vmem:[%s167 + $0x40] sm:$0xff] %v2085
        %2296 = vst [vmem:[%s167 + $0x48] sm:$0xff] %v2088
        %2297 = vst [vmem:[%s167 + $0x50] sm:$0xff] %v2093
        %2298 = vst [vmem:[%s167 + $0x58] sm:$0xff] %v2096
        %2299 = vst [vmem:[%s167 + $0x60] sm:$0xff] %v2101
        %2300 = vst [vmem:[%s167 + $0x68] sm:$0xff] %v2104
        %2301 = vst [vmem:[%s167 + $0x70] sm:$0xff] %v2109
        %2302 = vst [vmem:[%s167 + $0x78] sm:$0xff] %v2112
        %2303 = vst [vmem:[%s167 + $0x80] sm:$0xff] %v2117
        %2304 = vst [vmem:[%s167 + $0x88] sm:$0xff] %v2120
        %2305 = vst [vmem:[%s167 + $0x90] sm:$0xff] %v2125
        %2306 = vst [vmem:[%s167 + $0x98] sm:$0xff] %v2128
        %2307 = vst [vmem:[%s167 + $0xa0] sm:$0xff] %v2133
        %2308 = vst [vmem:[%s167 + $0xa8] sm:$0xff] %v2136
        %2309 = vst [vmem:[%s167 + $0xb0] sm:$0xff] %v2141
        %2310 = vst [vmem:[%s167 + $0xb8] sm:$0xff] %v2144
        %2311 = vst [vmem:[%s167 + $0xc0] sm:$0xff] %v2149
        %2312 = vst [vmem:[%s167 + $0xc8] sm:$0xff] %v2152
        %2313 = vst [vmem:[%s167 + $0xd0] sm:$0xff] %v2157
        %2314 = vst [vmem:[%s167 + $0xd8] sm:$0xff] %v2160
        %2315 = vst [vmem:[%s167 + $0xe0] sm:$0xff] %v2165
        %2316 = vst [vmem:[%s167 + $0xe8] sm:$0xff] %v2168
        %2317 = vst [vmem:[%s167 + $0xf0] sm:$0xff] %v2173
        %2318 = vst [vmem:[%s167 + $0xf8] sm:$0xff] %v2176
        %s2319 = sand.u32 %s76, 1
        %s2320 = scalar_lea.sflag [#allocation5], %s2319
        %s2321 = sand.u32 %s76, 1
        %s2322 = smul.addr %s2321, 256
        %s2323 = scalar_lea.vmem [#allocation4], %s2322
        %s2324 = sand.u32 %s102, 1
        %s2325 = scalar_lea.sflag [#allocation7], %s2324
        %s2326 = sand.u32 %s102, 1
        %s2327 = smul.addr %s2326, 2
        %s2328 = scalar_lea.vmem [#allocation6], %s2327
        // Predicated region
        $region29: #{tpu_custom_call.1} parent=27 // pred_check
          %p2329 = pneg %p86
        $region30: #{tpu_custom_call.1} parent=27 // pred_check_branch
          %2331 = sbr.rel (%p2329) target = $region32
        $region31: #{tpu_custom_call.1} parent=27 // pred_region
          %s2333 = ssub.s32 4096, 4096
          %2334 = vsyncadd %s2320, %s2333
          %s2335 = smul.addr %s21, 32
          %s2336 = smul.addr %s2335, 128
          %s2337 = scalar_lea.hbm %s2, %s2336
          %s2338 = sshll.u32 %s2323, 4
          %s2339 = int_to_ptr.vmem [resolvable:$true] %s2338
          %2344 = dma.vmem_to_hbm [thread:$0]  %s2339, 4096, %s2337, %s2320, 128, 128, 8
        $region32: #{tpu_custom_call.1} parent=27 // pred_fallthru
          _
        // Predicated region
        $region33: #{tpu_custom_call.1} parent=27 // pred_check
          %p2345 = pneg %p112
        $region34: #{tpu_custom_call.1} parent=27 // pred_check_branch
          %2347 = sbr.rel (%p2345) target = $region36
        $region35: #{tpu_custom_call.1} parent=27 // pred_region
          %s2349 = ssub.s32 32, 32
          %2350 = vsyncadd %s2325, %s2349
          %s2351 = smul.addr %s21, 32
          %s2352 = scalar_lea.hbm %s3, %s2351
          %s2354 = sshll.u32 %s2328, 4
          %s2355 = int_to_ptr.vmem [resolvable:$true] %s2354
          %2357 = dma.vmem_to_hbm [thread:$0]  %s2355, 32, %s2352, %s2325
        $region36: #{tpu_custom_call.1} parent=27 // pred_fallthru
          _
      $region28: #{tpu_custom_call.1} parent=5 // pred_fallthru
        _
      %p2358 = scmp.le.s32.totalorder 2, %s16
      // Predicated region
      $region37: #{tpu_custom_call.1} parent=5 // pred_check
        %p2359 = pneg %p2358
      $region38: #{tpu_custom_call.1} parent=5 // pred_check_branch
        %2361 = sbr.rel (%p2359) target = $region40
      $region39: #{tpu_custom_call.1} parent=5 // pred_region
        %s2362 = ssub.s32 %s16, 2
        // Predicated region
        $region41: #{tpu_custom_call.1} parent=39 // pred_check
          %p2363 = pneg %p92
        $region42: #{tpu_custom_call.1} parent=39 // pred_check_branch
          %2365 = sbr.rel (%p2363) target = $region44
        $region43: #{tpu_custom_call.1} parent=39 // pred_region
          %s2366 = sand.u32 %s77, 1
          %s2367 = scalar_lea.sflag [#allocation5], %s2366
          %s2368 = sand.u32 %s77, 1
          %s2369 = smul.addr %s2368, 256
          %s2370 = scalar_lea.vmem [#allocation4], %s2369
          %2371 = dma.done %s2367, 4096
        $region44: #{tpu_custom_call.1} parent=39 // pred_fallthru
          _
        // Predicated region
        $region45: #{tpu_custom_call.1} parent=39 // pred_check
          %p2372 = pneg %p118
        $region46: #{tpu_custom_call.1} parent=39 // pred_check_branch
          %2374 = sbr.rel (%p2372) target = $region48
        $region47: #{tpu_custom_call.1} parent=39 // pred_region
          %s2375 = sand.u32 %s103, 1
          %s2376 = scalar_lea.sflag [#allocation7], %s2375
          %s2377 = sand.u32 %s103, 1
          %s2378 = smul.addr %s2377, 2
          %s2379 = scalar_lea.vmem [#allocation6], %s2378
          %2380 = dma.done %s2376, 32
        $region48: #{tpu_custom_call.1} parent=39 // pred_fallthru
          _
      $region40: #{tpu_custom_call.1} parent=5 // pred_fallthru
        _
    $region6: #{tpu_custom_call.1} parent=1 // loop_footer
      %s20 = sadd.s32 1, %s16
    $region7: #{tpu_custom_call.1} parent=1 // loop_footer_branch
      %15 = sbr.rel target = $region3
    $region8: #{tpu_custom_call.1} parent=1 // loop_exit
      _
    %2381 = vsyncpa [#allocation5], 1
    %s2382 = scalar_lea.sflag [#allocation5], 1
    %2383 = vsyncpa %s2382, 1
    %2384 = vsyncpa [#allocation7], 1
    %s2385 = scalar_lea.sflag [#allocation7], 1
    %2386 = vsyncpa %s2385, 1

</llo_original>
